<compile_context>
chip_gen: v6e
topology: v6e:2x2x1
jax: 0.10.0
libtpu: 0.0.40
codegen_flags: <defaults>
</compile_context>

<pallas_src>
import functools

import jax
import jax.numpy as jnp
from jax import lax
from jax.experimental import pallas as pl
from jax.experimental.pallas import tpu as pltpu


def _basic_block_kernel(x_ref, w1_ref, w2_ref, b1_ref, b2_ref, o_ref, xp_ref, yp_ref,
                        *, Nb, H, WC, Hb, ROW0, M_rows, relu_out):
    """Fused BasicBlockMtl for Nb batch images, lane-dense (rows, W*C) layout.

    x_ref  : (Nb, H, WC)  f32 input block (also the residual source)
    w*_ref : (3, WC, WC)  bf16 banded conv weights (horizontal halo + BN scale folded)
    b*_ref : (1, WC)      f32 folded-BN shift (bias), replicated over W
    o_ref  : (Nb, H, WC)  f32 output block
    xp/yp  : (R, WC)      bf16 VMEM scratch: stacked padded slabs; image n's interior
                          lives at rows [ROW0 + n*Hb, ROW0 + n*Hb + H).
    """
    zrow = jnp.zeros((1, WC), jnp.bfloat16)

    # ---- stage the input images into the bf16 padded slab (interiors + 2 halo rows) ----
    for n in range(Nb):
        top = ROW0 + n * Hb
        xp_ref[top - 1:top, :] = zrow                       # top vertical halo
        xp_ref[top + H:top + H + 1, :] = zrow               # bottom vertical halo
        xp_ref[top:top + H, :] = x_ref[n].astype(jnp.bfloat16)

    def conv3x3(src_ref, w_ref):
        # Three (M_rows, WC) @ (WC, WC) matmuls (bf16 operands, f32 accumulation).
        # Result row n*Hb + h is the conv output row h of image n.
        acc = jnp.dot(src_ref[ROW0 - 1:ROW0 - 1 + M_rows, :], w_ref[0],
                      preferred_element_type=jnp.float32)
        for dh in (1, 2):
            acc = acc + jnp.dot(src_ref[ROW0 - 1 + dh:ROW0 - 1 + dh + M_rows, :],
                                w_ref[dh], preferred_element_type=jnp.float32)
        return acc

    # ---- conv1 (Conv2dMtl, BN1 scale folded) + BN1 shift + ReLU (stays in VMEM) ----
    h1 = jnp.maximum(conv3x3(xp_ref, w1_ref) + b1_ref[...], 0.0)
    for n in range(Nb):
        top = ROW0 + n * Hb
        yp_ref[top - 1:top, :] = zrow
        yp_ref[top + H:top + H + 1, :] = zrow
        yp_ref[top:top + H, :] = h1[n * Hb:n * Hb + H, :].astype(jnp.bfloat16)

    # ---- conv2 (Conv2dMtl, BN2 scale folded) + BN2 shift + residual (+ ReLU) ----
    h2 = conv3x3(yp_ref, w2_ref) + b2_ref[...]
    for n in range(Nb):
        y = h2[n * Hb:n * Hb + H, :] + x_ref[n]             # residual add, lane-dense
        if relu_out:
            y = jnp.maximum(y, 0.0)
        o_ref[n] = y                                        # (H, WC) aligned store


def _banded_conv3x3_weight(w_eff, W, col_scale, dtype=jnp.bfloat16):
    """(Cout, Cin, 3, 3) OIHW effective weight -> (3, W*Cin, W*Cout) bands.

    Band dh has entry [(w+dw-1)*Cin + ci, w*Cout + co] = w_eff[co, ci, dh, dw] (taps
    falling outside [0, W) are clipped to zero == horizontal zero padding), and each
    output column w*Cout + co is pre-multiplied by the folded BN scale[co].
    A padded-slab row p[h+dh] matmul'd with band dh yields the dh-row contribution of
    the padded 3x3 conv for output row h, directly lane-dense in (W*Cout).
    """
    cout, cin = w_eff.shape[0], w_eff.shape[1]
    w_eff = w_eff.astype(jnp.float32)
    bands = []
    for dh in range(3):
        band = jnp.zeros((W * cin, W * cout), jnp.float32)
        for dw in range(3):
            shift = jnp.eye(W, k=1 - dw, dtype=jnp.float32)   # boundary taps -> zero rows
            band = band + jnp.kron(shift, w_eff[:, :, dh, dw].T)
        bands.append(band)
    bands = jnp.stack(bands)                                   # (3, W*Cin, W*Cout)
    bands = bands * jnp.tile(col_scale.astype(jnp.float32), W)[None, None, :]
    return bands.astype(dtype)


def _folded_bn(gamma, beta, mean, var, eps):
    """Eval-mode BN folded to per-channel scale (into weights) and shift (bias)."""
    inv_std = 1.0 / jnp.sqrt(var.astype(jnp.float32) + eps)
    scale = gamma.astype(jnp.float32) * inv_std
    shift = beta.astype(jnp.float32) - mean.astype(jnp.float32) * scale
    return scale, shift


def basic_block_mtl(x_nchw, params, *, stride=1, last=False, eps=1e-5,
                    images_per_step=None):
    """Forward pass of BasicBlockMtl (downsample=None)."""
    if stride != 1:
        raise NotImplementedError("downsample=None path requires stride=1")
    N, C, H, W = x_nchw.shape
    planes = params["w1"].shape[0]
    assert planes == C and params["w2"].shape[0] == planes, \
        "downsample=None requires inplanes == planes"

    # Images per grid step: batch images to raise the MXU M dimension, but keep >= 2
    # grid steps when possible so both v7x TensorCores get work.
    if images_per_step is None:
        images_per_step = N // 2 if (N >= 2 and N % 2 == 0) else 1
    Nb = images_per_step
    assert N % Nb == 0, "batch must be divisible by images_per_step"

    # NCHW -> lane-dense (N, H, W*C) slabs (wrapper-side layout plumbing only).
    x_lane = jnp.transpose(x_nchw, (0, 2, 3, 1)).astype(jnp.float32).reshape(N, H, W * C)

    # Conv2dMtl effective weights (weight * mtl_weight) with BN scale folded into the
    # banded-matmul columns; BN shift stays as a per-lane bias.
    s1, sh1 = _folded_bn(params["g1"], params["b1"], params["m1"], params["v1"], eps)
    s2, sh2 = _folded_bn(params["g2"], params["b2"], params["m2"], params["v2"], eps)
    w1 = _banded_conv3x3_weight(params["w1"] * params["mtl1"], W, s1)
    w2 = _banded_conv3x3_weight(params["w2"] * params["mtl2"], W, s2)
    b1 = jnp.tile(sh1, W)[None, :]
    b2 = jnp.tile(sh2, W)[None, :]

    WC = W * C
    Hb = H + 8                      # per-image row stride in the stacked slab
    ROW0 = 8                        # interior of image 0 starts at a sublane boundary
    M_rows = (Nb - 1) * Hb + H      # MXU M dimension per banded matmul
    R = ROW0 + M_rows + 8           # scratch slab rows (covers all shifted windows)

    kernel = functools.partial(_basic_block_kernel, Nb=Nb, H=H, WC=WC, Hb=Hb,
                               ROW0=ROW0, M_rows=M_rows, relu_out=not last)

    out_lane = pl.pallas_call(
        kernel,
        out_shape=jax.ShapeDtypeStruct((N, H, WC), jnp.float32),
        grid=(N // Nb,),
        in_specs=[
            pl.BlockSpec((Nb, H, WC), lambda g: (g, 0, 0)),     # x (also residual)
            pl.BlockSpec((3, WC, WC), lambda g: (0, 0, 0)),     # conv1 banded weight
            pl.BlockSpec((3, WC, WC), lambda g: (0, 0, 0)),     # conv2 banded weight
            pl.BlockSpec((1, WC), lambda g: (0, 0)),            # bn1 shift (bias)
            pl.BlockSpec((1, WC), lambda g: (0, 0)),            # bn2 shift (bias)
        ],
        out_specs=pl.BlockSpec((Nb, H, WC), lambda g: (g, 0, 0)),
        scratch_shapes=[
            pltpu.VMEM((R, WC), jnp.bfloat16),                  # padded input slab
            pltpu.VMEM((R, WC), jnp.bfloat16),                  # padded conv1-out slab
        ],
        compiler_params=pltpu.CompilerParams(dimension_semantics=("parallel",)),
    )(x_lane, w1, w2, b1, b2)

    out = out_lane.reshape(N, H, W, planes)
    return jnp.transpose(out, (0, 3, 1, 2))                     # NHWC -> NCHW


# ---------------------------------------------------------------------------
# Pure-JAX reference (mirrors the PyTorch forward with matched precision:
# eval-mode BN scale folded into bf16 conv weights, f32 accumulation, f32 shift).
# ---------------------------------------------------------------------------
def _ref_basic_block(x_nchw, p, *, last=False, eps=1e-5):
    def fold(w, mtl, g, b, m, v):
        inv = 1.0 / jnp.sqrt(v + eps)
        scale, shift = g * inv, b - m * g * inv
        return (w * mtl) * scale[:, None, None, None], shift

    def conv(x, w):
        return lax.conv_general_dilated(
            x.astype(jnp.bfloat16), w.astype(jnp.bfloat16),
            window_strides=(1, 1), padding=((1, 1), (1, 1)),
            dimension_numbers=("NCHW", "OIHW", "NCHW"),
            preferred_element_type=jnp.float32)

    w1, s1 = fold(p["w1"], p["mtl1"], p["g1"], p["b1"], p["m1"], p["v1"])
    w2, s2 = fold(p["w2"], p["mtl2"], p["g2"], p["b2"], p["m2"], p["v2"])
    out = jnp.maximum(conv(x_nchw, w1) + s1[None, :, None, None], 0.0)
    out = conv(out, w2) + s2[None, :, None, None] + x_nchw
    if not last:
        out = jnp.maximum(out, 0.0)
    return out


if __name__ == "__main__":
    key = jax.random.PRNGKey(0)
    N, C, H, W = 4, 8, 16, 16          # inplanes == planes == 8, W*C == 128 lanes
    planes = C
    ks = jax.random.split(key, 12)

    x = jax.random.normal(ks[0], (N, C, H, W), jnp.float32)

    params = {
        # Conv2dMtl #1
        "w1":   jax.random.normal(ks[1], (planes, C, 3, 3), jnp.float32) * 0.1,
        "mtl1": 1.0 + 0.05 * jax.random.normal(ks[2], (planes, C, 1, 1), jnp.float32),
        # BatchNorm #1 (eval-mode running stats)
        "g1": 1.0 + 0.1 * jax.random.normal(ks[3], (planes,), jnp.float32),
        "b1": 0.1 * jax.random.normal(ks[4], (planes,), jnp.float32),
        "m1": 0.1 * jax.random.normal(ks[5], (planes,), jnp.float32),
        "v1": jax.random.uniform(ks[6], (planes,), jnp.float32, 0.5, 1.5),
        # Conv2dMtl #2
        "w2":   jax.random.normal(ks[7], (planes, planes, 3, 3), jnp.float32) * 0.1,
        "mtl2": 1.0 + 0.05 * jax.random.normal(ks[8], (planes, planes, 1, 1), jnp.float32),
        # BatchNorm #2
        "g2": 1.0 + 0.1 * jax.random.normal(ks[9], (planes,), jnp.float32),
        "b2": 0.1 * jax.random.normal(ks[10], (planes,), jnp.float32),
        "m2": 0.1 * jax.random.normal(ks[11], (planes,), jnp.float32),
        "v2": jax.random.uniform(ks[0], (planes,), jnp.float32, 0.5, 1.5),
    }

    out = basic_block_mtl(x, params, stride=1, last=False)   # Nb=2 images/step, 2 steps
    out = jax.block_until_ready(out)

    ref = _ref_basic_block(x, params, last=False)
    assert out.shape == (N, planes, H, W), out.shape
    max_err = float(jnp.max(jnp.abs(out - ref)))
    assert jnp.allclose(out, ref, rtol=5e-3, atol=5e-3), max_err

    print("KERNEL_OK")
</pallas_src>

<mosaic_0001>
module attributes {stable_mosaic.version = 11 : i64} {
  func.func @_basic_block_kernel(%arg0: i32, %arg1: memref<2x16x128xf32, #tpu.memory_space<vmem>>, %arg2: memref<3x128x128xbf16, #tpu.memory_space<vmem>>, %arg3: memref<3x128x128xbf16, #tpu.memory_space<vmem>>, %arg4: memref<1x128xf32, #tpu.memory_space<vmem>>, %arg5: memref<1x128xf32, #tpu.memory_space<vmem>>, %arg6: memref<2x16x128xf32, #tpu.memory_space<vmem>>, %arg7: memref<56x128xbf16, #tpu.memory_space<vmem>>, %arg8: memref<56x128xbf16, #tpu.memory_space<vmem>>) attributes {dimension_semantics = [#tpu.dimension_semantics<parallel>], iteration_bounds = array<i64: 2>, scalar_prefetch = 0 : i64, scratch_operands = 2 : i64, tpu.core_type = #tpu.core_type<tc>, window_params = [{transform_indices = @transform_0, window_bounds = array<i64: 2, 16, 128>}, {pipeline_mode = #tpu.pipeline_mode<synchronous>, transform_indices = @transform_1, window_bounds = array<i64: 3, 128, 128>}, {pipeline_mode = #tpu.pipeline_mode<synchronous>, transform_indices = @transform_2, window_bounds = array<i64: 3, 128, 128>}, {pipeline_mode = #tpu.pipeline_mode<synchronous>, transform_indices = @transform_3, window_bounds = array<i64: 1, 128>}, {pipeline_mode = #tpu.pipeline_mode<synchronous>, transform_indices = @transform_4, window_bounds = array<i64: 1, 128>}, {transform_indices = @transform_5, window_bounds = array<i64: 2, 16, 128>}]} {
    %cst = arith.constant 0.000000e+00 : bf16
    %0 = vector.broadcast %cst : bf16 to vector<1x128xbf16>
    %c7 = arith.constant 7 : index
    %c0 = arith.constant 0 : index
    %1 = vector.load %arg7[%c7, %c0] : memref<56x128xbf16, #tpu.memory_space<vmem>>, vector<1x128xbf16>
    tpu.vector_store %arg7[%c7, %c0], %0 {strides = array<i32>} : memref<56x128xbf16, #tpu.memory_space<vmem>>, vector<1x128xbf16>,
    %c24 = arith.constant 24 : index
    %c0_0 = arith.constant 0 : index
    %2 = vector.load %arg7[%c24, %c0_0] : memref<56x128xbf16, #tpu.memory_space<vmem>>, vector<1x128xbf16>
    tpu.vector_store %arg7[%c24, %c0_0], %0 {strides = array<i32>} : memref<56x128xbf16, #tpu.memory_space<vmem>>, vector<1x128xbf16>,
    %c0_1 = arith.constant 0 : index
    %c0_2 = arith.constant 0 : index
    %c0_3 = arith.constant 0 : index
    %3 = vector.load %arg1[%c0_1, %c0_2, %c0_3] : memref<2x16x128xf32, #tpu.memory_space<vmem>>, vector<1x16x128xf32>
    %4 = vector.shape_cast %3 : vector<1x16x128xf32> to vector<16x128xf32>
    %5 = arith.truncf %4 : vector<16x128xf32> to vector<16x128xbf16>
    %c8 = arith.constant 8 : index
    %c0_4 = arith.constant 0 : index
    %6 = vector.load %arg7[%c8, %c0_4] : memref<56x128xbf16, #tpu.memory_space<vmem>>, vector<16x128xbf16>
    tpu.vector_store %arg7[%c8, %c0_4], %5 {strides = array<i32>} : memref<56x128xbf16, #tpu.memory_space<vmem>>, vector<16x128xbf16>,
    %c31 = arith.constant 31 : index
    %c0_5 = arith.constant 0 : index
    %7 = vector.load %arg7[%c31, %c0_5] : memref<56x128xbf16, #tpu.memory_space<vmem>>, vector<1x128xbf16>
    tpu.vector_store %arg7[%c31, %c0_5], %0 {strides = array<i32>} : memref<56x128xbf16, #tpu.memory_space<vmem>>, vector<1x128xbf16>,
    %c48 = arith.constant 48 : index
    %c0_6 = arith.constant 0 : index
    %8 = vector.load %arg7[%c48, %c0_6] : memref<56x128xbf16, #tpu.memory_space<vmem>>, vector<1x128xbf16>
    tpu.vector_store %arg7[%c48, %c0_6], %0 {strides = array<i32>} : memref<56x128xbf16, #tpu.memory_space<vmem>>, vector<1x128xbf16>,
    %c1 = arith.constant 1 : index
    %c0_7 = arith.constant 0 : index
    %c0_8 = arith.constant 0 : index
    %9 = vector.load %arg1[%c1, %c0_7, %c0_8] : memref<2x16x128xf32, #tpu.memory_space<vmem>>, vector<1x16x128xf32>
    %10 = vector.shape_cast %9 : vector<1x16x128xf32> to vector<16x128xf32>
    %11 = arith.truncf %10 : vector<16x128xf32> to vector<16x128xbf16>
    %c32 = arith.constant 32 : index
    %c0_9 = arith.constant 0 : index
    %12 = vector.load %arg7[%c32, %c0_9] : memref<56x128xbf16, #tpu.memory_space<vmem>>, vector<16x128xbf16>
    tpu.vector_store %arg7[%c32, %c0_9], %11 {strides = array<i32>} : memref<56x128xbf16, #tpu.memory_space<vmem>>, vector<16x128xbf16>,
    %c7_10 = arith.constant 7 : index
    %c0_11 = arith.constant 0 : index
    %13 = vector.load %arg7[%c7_10, %c0_11] : memref<56x128xbf16, #tpu.memory_space<vmem>>, vector<40x128xbf16>
    %c0_12 = arith.constant 0 : index
    %c0_13 = arith.constant 0 : index
    %c0_14 = arith.constant 0 : index
    %14 = vector.load %arg2[%c0_12, %c0_13, %c0_14] : memref<3x128x128xbf16, #tpu.memory_space<vmem>>, vector<1x128x128xbf16>
    %15 = vector.shape_cast %14 : vector<1x128x128xbf16> to vector<128x128xbf16>
    %cst_15 = arith.constant dense<0.000000e+00> : vector<40x128xf32>
    %16 = tpu.matmul %13, %15, %cst_15 {dimension_numbers = #tpu.dot_dimension_numbers<[1], [0], [0], [1], [0, 0, 1, 1], [], []>} : vector<40x128xbf16>, vector<128x128xbf16>, vector<40x128xf32> -> vector<40x128xf32>
    %c8_16 = arith.constant 8 : index
    %c0_17 = arith.constant 0 : index
    %17 = vector.load %arg7[%c8_16, %c0_17] : memref<56x128xbf16, #tpu.memory_space<vmem>>, vector<40x128xbf16>
    %c1_18 = arith.constant 1 : index
    %c0_19 = arith.constant 0 : index
    %c0_20 = arith.constant 0 : index
    %18 = vector.load %arg2[%c1_18, %c0_19, %c0_20] : memref<3x128x128xbf16, #tpu.memory_space<vmem>>, vector<1x128x128xbf16>
    %19 = vector.shape_cast %18 : vector<1x128x128xbf16> to vector<128x128xbf16>
    %cst_21 = arith.constant dense<0.000000e+00> : vector<40x128xf32>
    %20 = tpu.matmul %17, %19, %cst_21 {dimension_numbers = #tpu.dot_dimension_numbers<[1], [0], [0], [1], [0, 0, 1, 1], [], []>} : vector<40x128xbf16>, vector<128x128xbf16>, vector<40x128xf32> -> vector<40x128xf32>
    %21 = arith.addf %16, %20 : vector<40x128xf32>
    %c9 = arith.constant 9 : index
    %c0_22 = arith.constant 0 : index
    %22 = vector.load %arg7[%c9, %c0_22] : memref<56x128xbf16, #tpu.memory_space<vmem>>, vector<40x128xbf16>
    %c2 = arith.constant 2 : index
    %c0_23 = arith.constant 0 : index
    %c0_24 = arith.constant 0 : index
    %23 = vector.load %arg2[%c2, %c0_23, %c0_24] : memref<3x128x128xbf16, #tpu.memory_space<vmem>>, vector<1x128x128xbf16>
    %24 = vector.shape_cast %23 : vector<1x128x128xbf16> to vector<128x128xbf16>
    %cst_25 = arith.constant dense<0.000000e+00> : vector<40x128xf32>
    %25 = tpu.matmul %22, %24, %cst_25 {dimension_numbers = #tpu.dot_dimension_numbers<[1], [0], [0], [1], [0, 0, 1, 1], [], []>} : vector<40x128xbf16>, vector<128x128xbf16>, vector<40x128xf32> -> vector<40x128xf32>
    %26 = arith.addf %21, %25 : vector<40x128xf32>
    %c0_26 = arith.constant 0 : index
    %c0_27 = arith.constant 0 : index
    %27 = vector.load %arg4[%c0_26, %c0_27] : memref<1x128xf32, #tpu.memory_space<vmem>>, vector<1x128xf32>
    %28 = vector.broadcast %27 : vector<1x128xf32> to vector<40x128xf32>
    %29 = arith.addf %26, %28 : vector<40x128xf32>
    %cst_28 = arith.constant 0.000000e+00 : f32
    %30 = vector.broadcast %cst_28 : f32 to vector<40x128xf32>
    %31 = arith.maximumf %29, %30 : vector<40x128xf32>
    %c7_29 = arith.constant 7 : index
    %c0_30 = arith.constant 0 : index
    %32 = vector.load %arg8[%c7_29, %c0_30] : memref<56x128xbf16, #tpu.memory_space<vmem>>, vector<1x128xbf16>
    tpu.vector_store %arg8[%c7_29, %c0_30], %0 {strides = array<i32>} : memref<56x128xbf16, #tpu.memory_space<vmem>>, vector<1x128xbf16>,
    %c24_31 = arith.constant 24 : index
    %c0_32 = arith.constant 0 : index
    %33 = vector.load %arg8[%c24_31, %c0_32] : memref<56x128xbf16, #tpu.memory_space<vmem>>, vector<1x128xbf16>
    tpu.vector_store %arg8[%c24_31, %c0_32], %0 {strides = array<i32>} : memref<56x128xbf16, #tpu.memory_space<vmem>>, vector<1x128xbf16>,
    %34 = vector.extract_strided_slice %31 {offsets = [0, 0], sizes = [16, 128], strides = [1, 1]} : vector<40x128xf32> to vector<16x128xf32>
    %35 = arith.truncf %34 : vector<16x128xf32> to vector<16x128xbf16>
    %c8_33 = arith.constant 8 : index
    %c0_34 = arith.constant 0 : index
    %36 = vector.load %arg8[%c8_33, %c0_34] : memref<56x128xbf16, #tpu.memory_space<vmem>>, vector<16x128xbf16>
    tpu.vector_store %arg8[%c8_33, %c0_34], %35 {strides = array<i32>} : memref<56x128xbf16, #tpu.memory_space<vmem>>, vector<16x128xbf16>,
    %c31_35 = arith.constant 31 : index
    %c0_36 = arith.constant 0 : index
    %37 = vector.load %arg8[%c31_35, %c0_36] : memref<56x128xbf16, #tpu.memory_space<vmem>>, vector<1x128xbf16>
    tpu.vector_store %arg8[%c31_35, %c0_36], %0 {strides = array<i32>} : memref<56x128xbf16, #tpu.memory_space<vmem>>, vector<1x128xbf16>,
    %c48_37 = arith.constant 48 : index
    %c0_38 = arith.constant 0 : index
    %38 = vector.load %arg8[%c48_37, %c0_38] : memref<56x128xbf16, #tpu.memory_space<vmem>>, vector<1x128xbf16>
    tpu.vector_store %arg8[%c48_37, %c0_38], %0 {strides = array<i32>} : memref<56x128xbf16, #tpu.memory_space<vmem>>, vector<1x128xbf16>,
    %39 = vector.extract_strided_slice %31 {offsets = [24, 0], sizes = [16, 128], strides = [1, 1]} : vector<40x128xf32> to vector<16x128xf32>
    %40 = arith.truncf %39 : vector<16x128xf32> to vector<16x128xbf16>
    %c32_39 = arith.constant 32 : index
    %c0_40 = arith.constant 0 : index
    %41 = vector.load %arg8[%c32_39, %c0_40] : memref<56x128xbf16, #tpu.memory_space<vmem>>, vector<16x128xbf16>
    tpu.vector_store %arg8[%c32_39, %c0_40], %40 {strides = array<i32>} : memref<56x128xbf16, #tpu.memory_space<vmem>>, vector<16x128xbf16>,
    %c7_41 = arith.constant 7 : index
    %c0_42 = arith.constant 0 : index
    %42 = vector.load %arg8[%c7_41, %c0_42] : memref<56x128xbf16, #tpu.memory_space<vmem>>, vector<40x128xbf16>
    %c0_43 = arith.constant 0 : index
    %c0_44 = arith.constant 0 : index
    %c0_45 = arith.constant 0 : index
    %43 = vector.load %arg3[%c0_43, %c0_44, %c0_45] : memref<3x128x128xbf16, #tpu.memory_space<vmem>>, vector<1x128x128xbf16>
    %44 = vector.shape_cast %43 : vector<1x128x128xbf16> to vector<128x128xbf16>
    %cst_46 = arith.constant dense<0.000000e+00> : vector<40x128xf32>
    %45 = tpu.matmul %42, %44, %cst_46 {dimension_numbers = #tpu.dot_dimension_numbers<[1], [0], [0], [1], [0, 0, 1, 1], [], []>} : vector<40x128xbf16>, vector<128x128xbf16>, vector<40x128xf32> -> vector<40x128xf32>
    %c8_47 = arith.constant 8 : index
    %c0_48 = arith.constant 0 : index
    %46 = vector.load %arg8[%c8_47, %c0_48] : memref<56x128xbf16, #tpu.memory_space<vmem>>, vector<40x128xbf16>
    %c1_49 = arith.constant 1 : index
    %c0_50 = arith.constant 0 : index
    %c0_51 = arith.constant 0 : index
    %47 = vector.load %arg3[%c1_49, %c0_50, %c0_51] : memref<3x128x128xbf16, #tpu.memory_space<vmem>>, vector<1x128x128xbf16>
    %48 = vector.shape_cast %47 : vector<1x128x128xbf16> to vector<128x128xbf16>
    %cst_52 = arith.constant dense<0.000000e+00> : vector<40x128xf32>
    %49 = tpu.matmul %46, %48, %cst_52 {dimension_numbers = #tpu.dot_dimension_numbers<[1], [0], [0], [1], [0, 0, 1, 1], [], []>} : vector<40x128xbf16>, vector<128x128xbf16>, vector<40x128xf32> -> vector<40x128xf32>
    %50 = arith.addf %45, %49 : vector<40x128xf32>
    %c9_53 = arith.constant 9 : index
    %c0_54 = arith.constant 0 : index
    %51 = vector.load %arg8[%c9_53, %c0_54] : memref<56x128xbf16, #tpu.memory_space<vmem>>, vector<40x128xbf16>
    %c2_55 = arith.constant 2 : index
    %c0_56 = arith.constant 0 : index
    %c0_57 = arith.constant 0 : index
    %52 = vector.load %arg3[%c2_55, %c0_56, %c0_57] : memref<3x128x128xbf16, #tpu.memory_space<vmem>>, vector<1x128x128xbf16>
    %53 = vector.shape_cast %52 : vector<1x128x128xbf16> to vector<128x128xbf16>
    %cst_58 = arith.constant dense<0.000000e+00> : vector<40x128xf32>
    %54 = tpu.matmul %51, %53, %cst_58 {dimension_numbers = #tpu.dot_dimension_numbers<[1], [0], [0], [1], [0, 0, 1, 1], [], []>} : vector<40x128xbf16>, vector<128x128xbf16>, vector<40x128xf32> -> vector<40x128xf32>
    %55 = arith.addf %50, %54 : vector<40x128xf32>
    %c0_59 = arith.constant 0 : index
    %c0_60 = arith.constant 0 : index
    %56 = vector.load %arg5[%c0_59, %c0_60] : memref<1x128xf32, #tpu.memory_space<vmem>>, vector<1x128xf32>
    %57 = vector.broadcast %56 : vector<1x128xf32> to vector<40x128xf32>
    %58 = arith.addf %55, %57 : vector<40x128xf32>
    %59 = vector.extract_strided_slice %58 {offsets = [0, 0], sizes = [16, 128], strides = [1, 1]} : vector<40x128xf32> to vector<16x128xf32>
    %c0_61 = arith.constant 0 : index
    %c0_62 = arith.constant 0 : index
    %c0_63 = arith.constant 0 : index
    %60 = vector.load %arg1[%c0_61, %c0_62, %c0_63] : memref<2x16x128xf32, #tpu.memory_space<vmem>>, vector<1x16x128xf32>
    %61 = vector.shape_cast %60 : vector<1x16x128xf32> to vector<16x128xf32>
    %62 = arith.addf %59, %61 : vector<16x128xf32>
    %cst_64 = arith.constant 0.000000e+00 : f32
    %63 = vector.broadcast %cst_64 : f32 to vector<16x128xf32>
    %64 = arith.maximumf %62, %63 : vector<16x128xf32>
    %c0_65 = arith.constant 0 : index
    %c0_66 = arith.constant 0 : index
    %c0_67 = arith.constant 0 : index
    %65 = vector.load %arg6[%c0_65, %c0_66, %c0_67] : memref<2x16x128xf32, #tpu.memory_space<vmem>>, vector<1x16x128xf32>
    %66 = vector.shape_cast %65 : vector<1x16x128xf32> to vector<16x128xf32>
    %67 = vector.shape_cast %64 : vector<16x128xf32> to vector<1x16x128xf32>
    tpu.vector_store %arg6[%c0_65, %c0_66, %c0_67], %67 {strides = array<i32>} : memref<2x16x128xf32, #tpu.memory_space<vmem>>, vector<1x16x128xf32>,
    %68 = vector.extract_strided_slice %58 {offsets = [24, 0], sizes = [16, 128], strides = [1, 1]} : vector<40x128xf32> to vector<16x128xf32>
    %c1_68 = arith.constant 1 : index
    %c0_69 = arith.constant 0 : index
    %c0_70 = arith.constant 0 : index
    %69 = vector.load %arg1[%c1_68, %c0_69, %c0_70] : memref<2x16x128xf32, #tpu.memory_space<vmem>>, vector<1x16x128xf32>
    %70 = vector.shape_cast %69 : vector<1x16x128xf32> to vector<16x128xf32>
    %71 = arith.addf %68, %70 : vector<16x128xf32>
    %cst_71 = arith.constant 0.000000e+00 : f32
    %72 = vector.broadcast %cst_71 : f32 to vector<16x128xf32>
    %73 = arith.maximumf %71, %72 : vector<16x128xf32>
    %c1_72 = arith.constant 1 : index
    %c0_73 = arith.constant 0 : index
    %c0_74 = arith.constant 0 : index
    %74 = vector.load %arg6[%c1_72, %c0_73, %c0_74] : memref<2x16x128xf32, #tpu.memory_space<vmem>>, vector<1x16x128xf32>
    %75 = vector.shape_cast %74 : vector<1x16x128xf32> to vector<16x128xf32>
    %76 = vector.shape_cast %73 : vector<16x128xf32> to vector<1x16x128xf32>
    tpu.vector_store %arg6[%c1_72, %c0_73, %c0_74], %76 {strides = array<i32>} : memref<2x16x128xf32, #tpu.memory_space<vmem>>, vector<1x16x128xf32>,
    return
  }
  func.func @transform_0(%arg0: i32) -> (i32, i32, i32) {
    %c0_i32 = arith.constant 0 : i32
    %c0_i32_0 = arith.constant 0 : i32
    %c0_i32_1 = arith.constant 0 : i32
    return %arg0, %c0_i32, %c0_i32_0 : i32, i32, i32
  }
  func.func @transform_1(%arg0: i32) -> (i32, i32, i32) {
    %c0_i32 = arith.constant 0 : i32
    %c0_i32_0 = arith.constant 0 : i32
    %c0_i32_1 = arith.constant 0 : i32
    %c0_i32_2 = arith.constant 0 : i32
    return %c0_i32, %c0_i32_0, %c0_i32_1 : i32, i32, i32
  }
  func.func @transform_2(%arg0: i32) -> (i32, i32, i32) {
    %c0_i32 = arith.constant 0 : i32
    %c0_i32_0 = arith.constant 0 : i32
    %c0_i32_1 = arith.constant 0 : i32
    %c0_i32_2 = arith.constant 0 : i32
    return %c0_i32, %c0_i32_0, %c0_i32_1 : i32, i32, i32
  }
  func.func @transform_3(%arg0: i32) -> (i32, i32) {
    %c0_i32 = arith.constant 0 : i32
    %c0_i32_0 = arith.constant 0 : i32
    %c0_i32_1 = arith.constant 0 : i32
    return %c0_i32, %c0_i32_0 : i32, i32
  }
  func.func @transform_4(%arg0: i32) -> (i32, i32) {
    %c0_i32 = arith.constant 0 : i32
    %c0_i32_0 = arith.constant 0 : i32
    %c0_i32_1 = arith.constant 0 : i32
    return %c0_i32, %c0_i32_0 : i32, i32
  }
  func.func @transform_5(%arg0: i32) -> (i32, i32, i32) {
    %c0_i32 = arith.constant 0 : i32
    %c0_i32_0 = arith.constant 0 : i32
    %c0_i32_1 = arith.constant 0 : i32
    return %arg0, %c0_i32, %c0_i32_0 : i32, i32, i32
  }
}

</mosaic_0001>

<llo_original>
// kernel: tpu_custom_call.1
$region0: #{tpu_custom_call.1}
  #allocation0 [shape = 'u32[]', space=smem, size = 0x4, offset = 0x4, fixed_abs, tag = 'smem constant byte address 0x4 - core index']
  #allocation1 [shape = 'u32[144,128]{1,0:T(1,128)}', space=vmem, size = 0x12000, scoped, tag = 'internal scratch']
  #allocation2 [shape = 'bf16[56,128]{1,0:T(8,128)(2,1)}', space=vmem, size = 0x3800, scoped, tag = 'scratch operand']
  #allocation3 [shape = 'bf16[56,128]{1,0:T(8,128)(2,1)}', space=vmem, size = 0x3800, scoped, tag = 'scratch operand']
  %s0 = inlined_call_operand.hbm [shape: f32[4,16,128], index: 0, kind: input, shape index: {}]
  %s1 = inlined_call_operand.hbm [shape: bf16[3,128,128], index: 1, kind: input, shape index: {}]
  %s2 = inlined_call_operand.hbm [shape: bf16[3,128,128], index: 2, kind: input, shape index: {}]
  %s3 = inlined_call_operand.vmem [shape: f32[1,128], index: 3, kind: input, shape index: {}]
  %s4 = inlined_call_operand.vmem [shape: f32[1,128], index: 4, kind: input, shape index: {}]
  %s5 = inlined_call_operand.hbm [shape: f32[4,16,128], index: 5, kind: output, shape index: {}]
  %s6 = sld [smem:[#allocation0]]
  $region65: #{tpu_custom_call.1} parent=0
    _
  %s8 = ssub.s32 1, %s6
  %s9 = scalar_select 0, %s8, %s6
  $region1: #{tpu_custom_call.1} parent=0
    #allocation4 [shape = 'u8[32768]{0}', space=vmem, size = 0x8000, scoped, tag = 'input window, operand 0']
    #allocation5 [shape = 's32[2]{0}', space=sflag, size = 0x8, scoped, tag = 'scoped memory for tpu_custom_call.1']
    #allocation6 [shape = 's32[2]{0}', space=sflag, size = 0x8, scoped, tag = 'scoped memory for tpu_custom_call.1']
    #allocation7 [shape = 'u8[98304]{0}', space=vmem, size = 0x18000, scoped, tag = 'input window, operand 1, single buffered']
    #allocation8 [shape = 's32[1]{0}', space=sflag, size = 0x4, scoped, tag = 'scoped memory for tpu_custom_call.1']
    #allocation9 [shape = 'u8[98304]{0}', space=vmem, size = 0x18000, scoped, tag = 'input window, operand 2, single buffered']
    #allocation10 [shape = 'u8[32768]{0}', space=vmem, size = 0x8000, scoped, tag = 'output window, operand 0']
    %10 = vsyncpa [#allocation5], 0
    %s11 = scalar_lea.sflag [#allocation5], 1
    %12 = vsyncpa %s11, 0
    %13 = vsyncpa [#allocation8], 0
    %14 = vsyncpa [#allocation6], 0
    %s15 = scalar_lea.sflag [#allocation6], 1
    %16 = vsyncpa %s15, 0
    loop: start=0, step=1, limit=4
    $region2: #{tpu_custom_call.1} parent=1 // loop_pre_header
      _
    $region3: #{tpu_custom_call.1} parent=1 // loop_header
      %s18 = sphi 0, %s22
      %p19 = scmp.ge.s32.totalorder %s18, 4
      %s28 = sphi 0, %s30
      %s31 = sphi 0, %s28
      %s32 = sphi 0, %s31
      %s48 = sphi 0, %s32
      %s52 = sphi 0, %s52
      %s54 = sphi 0, %s52
      %s55 = sphi 0, %s54
      %s69 = sphi 0, %s55
      %s73 = sphi 0, %s73
      %s75 = sphi 0, %s73
      %s76 = sphi 0, %s75
      %s90 = sphi 0, %s76
      %s94 = sphi 0, %s94
      %s96 = sphi 0, %s94
      %s97 = sphi 0, %s96
      %s111 = sphi 0, %s97
      %s115 = sphi 0, %s115
      %s117 = sphi 0, %s115
      %s118 = sphi 0, %s117
      %s132 = sphi 0, %s118
      %s138 = sphi 0, %s140
      %s141 = sphi 0, %s138
      %s142 = sphi 0, %s141
      %s158 = sphi 0, %s142
    $region4: #{tpu_custom_call.1} parent=1 // loop_header_branch
      %21 = sbr.rel (%p19) target = $region8
    $region5: #{tpu_custom_call.1} parent=1 // loop_body
      %s23 = ssub.s32 %s18, 1
      %s24 = ssub.s32 %s18, 2
      %s25 = sadd.s32 %s18, 1
      %s26 = ssub.s32 %s18, %s25
      %p27 = scmp.eq.s32.totalorder %s26, 0
      %s29 = sadd.s32 %s28, 1
      %s30 = scalar_select %p27, %s28, %s29
      %p33 = pneg %p27
      %p34 = scmp.eq.s32.totalorder %s18, 1
      %p35 = por %p33, %p34
      %p36 = scmp.ne.s32.totalorder %s28, %s31
      %p37 = scmp.eq.s32.totalorder %s18, 0
      %p38 = por %p36, %p37
      %p39 = scmp.ne.s32.totalorder %s28, %s31
      %p40 = scmp.eq.s32.totalorder %s23, 1
      %p41 = por %p39, %p40
      %p42 = scmp.ne.s32.totalorder %s31, %s32
      %p43 = scmp.eq.s32.totalorder %s23, 0
      %p44 = por %p42, %p43
      %p45 = scmp.ne.s32.totalorder %s31, %s32
      %p46 = scmp.eq.s32.totalorder %s24, 1
      %p47 = por %p45, %p46
      %p49 = scmp.ne.s32.totalorder %s32, %s48
      %p50 = scmp.eq.s32.totalorder %s24, 0
      %p51 = por %p49, %p50
      %s53 = sadd.s32 %s52, 1
      %p56 = scmp.eq.s32.totalorder %s18, 1
      %p57 = scmp.ne.s32.totalorder %s52, %s54
      %p58 = scmp.eq.s32.totalorder %s18, 0
      %p59 = por %p57, %p58
      %p60 = scmp.ne.s32.totalorder %s52, %s54
      %p61 = scmp.eq.s32.totalorder %s23, 1
      %p62 = por %p60, %p61
      %p63 = scmp.ne.s32.totalorder %s54, %s55
      %p64 = scmp.eq.s32.totalorder %s23, 0
      %p65 = por %p63, %p64
      %p66 = scmp.ne.s32.totalorder %s54, %s55
      %p67 = scmp.eq.s32.totalorder %s24, 1
      %p68 = por %p66, %p67
      %p70 = scmp.ne.s32.totalorder %s55, %s69
      %p71 = scmp.eq.s32.totalorder %s24, 0
      %p72 = por %p70, %p71
      %s74 = sadd.s32 %s73, 1
      %p77 = scmp.eq.s32.totalorder %s18, 1
      %p78 = scmp.ne.s32.totalorder %s73, %s75
      %p79 = scmp.eq.s32.totalorder %s18, 0
      %p80 = por %p78, %p79
      %p81 = scmp.ne.s32.totalorder %s73, %s75
      %p82 = scmp.eq.s32.totalorder %s23, 1
      %p83 = por %p81, %p82
      %p84 = scmp.ne.s32.totalorder %s75, %s76
      %p85 = scmp.eq.s32.totalorder %s23, 0
      %p86 = por %p84, %p85
      %p87 = scmp.ne.s32.totalorder %s75, %s76
      %p88 = scmp.eq.s32.totalorder %s24, 1
      %p89 = por %p87, %p88
      %p91 = scmp.ne.s32.totalorder %s76, %s90
      %p92 = scmp.eq.s32.totalorder %s24, 0
      %p93 = por %p91, %p92
      %s95 = sadd.s32 %s94, 1
      %p98 = scmp.eq.s32.totalorder %s18, 1
      %p99 = scmp.ne.s32.totalorder %s94, %s96
      %p100 = scmp.eq.s32.totalorder %s18, 0
      %p101 = por %p99, %p100
      %p102 = scmp.ne.s32.totalorder %s94, %s96
      %p103 = scmp.eq.s32.totalorder %s23, 1
      %p104 = por %p102, %p103
      %p105 = scmp.ne.s32.totalorder %s96, %s97
      %p106 = scmp.eq.s32.totalorder %s23, 0
      %p107 = por %p105, %p106
      %p108 = scmp.ne.s32.totalorder %s96, %s97
      %p109 = scmp.eq.s32.totalorder %s24, 1
      %p110 = por %p108, %p109
      %p112 = scmp.ne.s32.totalorder %s97, %s111
      %p113 = scmp.eq.s32.totalorder %s24, 0
      %p114 = por %p112, %p113
      %s116 = sadd.s32 %s115, 1
      %p119 = scmp.eq.s32.totalorder %s18, 1
      %p120 = scmp.ne.s32.totalorder %s115, %s117
      %p121 = scmp.eq.s32.totalorder %s18, 0
      %p122 = por %p120, %p121
      %p123 = scmp.ne.s32.totalorder %s115, %s117
      %p124 = scmp.eq.s32.totalorder %s23, 1
      %p125 = por %p123, %p124
      %p126 = scmp.ne.s32.totalorder %s117, %s118
      %p127 = scmp.eq.s32.totalorder %s23, 0
      %p128 = por %p126, %p127
      %p129 = scmp.ne.s32.totalorder %s117, %s118
      %p130 = scmp.eq.s32.totalorder %s24, 1
      %p131 = por %p129, %p130
      %p133 = scmp.ne.s32.totalorder %s118, %s132
      %p134 = scmp.eq.s32.totalorder %s24, 0
      %p135 = por %p133, %p134
      %s136 = ssub.s32 %s18, %s25
      %p137 = scmp.eq.s32.totalorder %s136, 0
      %s139 = sadd.s32 %s138, 1
      %s140 = scalar_select %p137, %s138, %s139
      %p143 = pneg %p137
      %p144 = scmp.eq.s32.totalorder %s18, 1
      %p145 = por %p143, %p144
      %p146 = scmp.ne.s32.totalorder %s138, %s141
      %p147 = scmp.eq.s32.totalorder %s18, 0
      %p148 = por %p146, %p147
      %p149 = scmp.ne.s32.totalorder %s138, %s141
      %p150 = scmp.eq.s32.totalorder %s23, 1
      %p151 = por %p149, %p150
      %p152 = scmp.ne.s32.totalorder %s141, %s142
      %p153 = scmp.eq.s32.totalorder %s23, 0
      %p154 = por %p152, %p153
      %p155 = scmp.ne.s32.totalorder %s141, %s142
      %p156 = scmp.eq.s32.totalorder %s24, 1
      %p157 = por %p155, %p156
      %p159 = scmp.ne.s32.totalorder %s142, %s158
      %p160 = scmp.eq.s32.totalorder %s24, 0
      %p161 = por %p159, %p160
      %p162 = scmp.le.s32.totalorder 1, %s18
      %p163 = scmp.lt.s32.totalorder %s18, 3
      %p164 = pnand %p162, %p163
      %p165 = pneg %p164
      // Predicated region
      $region9: #{tpu_custom_call.1} parent=5 // pred_check
        _
      $region10: #{tpu_custom_call.1} parent=5 // pred_check_branch
        %167 = sbr.rel (%p164) target = $region12
      $region11: #{tpu_custom_call.1} parent=5 // pred_region
        %s168 = ssub.s32 %s18, 1
        // Predicated region
        $region13: #{tpu_custom_call.1} parent=11 // pred_check
          %p169 = pneg %p65
        $region14: #{tpu_custom_call.1} parent=11 // pred_check_branch
          %171 = sbr.rel (%p169) target = $region16
        $region15: #{tpu_custom_call.1} parent=11 // pred_region
          %s173 = ssub.s32 3072, 3072
          %174 = vsyncadd [#allocation8], %s173
          %s175 = sshll.u32 [#allocation7], 4
          %s176 = int_to_ptr.vmem [resolvable:$true] %s175
          %181 = dma.hbm_to_vmem [thread:$0]  %s1, 3072, %s176, [#allocation8], 64, 64, 4
        $region16: #{tpu_custom_call.1} parent=11 // pred_fallthru
          _
        // Predicated region
        $region17: #{tpu_custom_call.1} parent=11 // pred_check
          %p182 = pneg %p86
        $region18: #{tpu_custom_call.1} parent=11 // pred_check_branch
          %184 = sbr.rel (%p182) target = $region20
        $region19: #{tpu_custom_call.1} parent=11 // pred_region
          %s186 = ssub.s32 3072, 3072
          %187 = vsyncadd [#allocation8], %s186
          %s188 = sshll.u32 [#allocation9], 4
          %s189 = int_to_ptr.vmem [resolvable:$true] %s188
          %194 = dma.hbm_to_vmem [thread:$0]  %s2, 3072, %s189, [#allocation8], 64, 64, 4
        $region20: #{tpu_custom_call.1} parent=11 // pred_fallthru
          _
        // Predicated region
        $region21: #{tpu_custom_call.1} parent=11 // pred_check
          %p195 = pneg %p107
        $region22: #{tpu_custom_call.1} parent=11 // pred_check_branch
          %197 = sbr.rel (%p195) target = $region24
        $region23: #{tpu_custom_call.1} parent=11 // pred_region
          _
        $region24: #{tpu_custom_call.1} parent=11 // pred_fallthru
          _
        // Predicated region
        $region25: #{tpu_custom_call.1} parent=11 // pred_check
          %p198 = pneg %p128
        $region26: #{tpu_custom_call.1} parent=11 // pred_check_branch
          %200 = sbr.rel (%p198) target = $region28
        $region27: #{tpu_custom_call.1} parent=11 // pred_region
          _
        $region28: #{tpu_custom_call.1} parent=11 // pred_fallthru
          _
      $region12: #{tpu_custom_call.1} parent=5 // pred_fallthru
        _
      %p201 = scmp.lt.s32.totalorder %s18, 2
      // Predicated region
      $region29: #{tpu_custom_call.1} parent=5 // pred_check
        %p202 = pneg %p201
      $region30: #{tpu_custom_call.1} parent=5 // pred_check_branch
        %204 = sbr.rel (%p202) target = $region32
      $region31: #{tpu_custom_call.1} parent=5 // pred_region
        // Predicated region
        $region33: #{tpu_custom_call.1} parent=31 // pred_check
          %p205 = pneg %p38
        $region34: #{tpu_custom_call.1} parent=31 // pred_check_branch
          %207 = sbr.rel (%p205) target = $region36
        $region35: #{tpu_custom_call.1} parent=31 // pred_region
          %s208 = sand.u32 %s28, 1
          %s209 = scalar_lea.sflag [#allocation5], %s208
          %s210 = sand.u32 %s28, 1
          %s211 = smul.addr %s210, 32
          %s212 = scalar_lea.vmem [#allocation4], %s211
          %s213 = smul.u32 2, %s18
          %s215 = ssub.s32 512, 512
          %216 = vsyncadd %s209, %s215
          %s217 = smul.addr %s213, 2
          %s218 = smul.addr %s217, 128
          %s219 = scalar_lea.hbm %s0, %s218
          %s220 = sshll.u32 %s212, 4
          %s221 = int_to_ptr.vmem [resolvable:$true] %s220
          %226 = dma.hbm_to_vmem [thread:$0]  %s219, 512, %s221, %s209, 128, 128, 8
        $region36: #{tpu_custom_call.1} parent=31 // pred_fallthru
          _
      $region32: #{tpu_custom_call.1} parent=5 // pred_fallthru
        _
      %p227 = scmp.le.s32.totalorder 1, %s18
      %p228 = scmp.lt.s32.totalorder %s18, 3
      %p229 = pnand %p227, %p228
      %p230 = pneg %p229
      // Predicated region
      $region37: #{tpu_custom_call.1} parent=5 // pred_check
        _
      $region38: #{tpu_custom_call.1} parent=5 // pred_check_branch
        %232 = sbr.rel (%p229) target = $region40
      $region39: #{tpu_custom_call.1} parent=5 // pred_region
        %s233 = ssub.s32 %s18, 1
        %s234 = sand.u32 %s31, 1
        %s235 = scalar_lea.sflag [#allocation5], %s234
        %s236 = sand.u32 %s31, 1
        %s237 = smul.addr %s236, 32
        %s238 = scalar_lea.vmem [#allocation4], %s237
        // Predicated region
        $region41: #{tpu_custom_call.1} parent=39 // pred_check
          %p239 = pneg %p44
        $region42: #{tpu_custom_call.1} parent=39 // pred_check_branch
          %241 = sbr.rel (%p239) target = $region44
        $region43: #{tpu_custom_call.1} parent=39 // pred_region
          %242 = dma.done %s235, 512
        $region44: #{tpu_custom_call.1} parent=39 // pred_fallthru
          _
        // Predicated region
        $region45: #{tpu_custom_call.1} parent=39 // pred_check
          %p243 = pneg %p65
        $region46: #{tpu_custom_call.1} parent=39 // pred_check_branch
          %245 = sbr.rel (%p243) target = $region48
        $region47: #{tpu_custom_call.1} parent=39 // pred_region
          %246 = dma.done [#allocation8], 3072
        $region48: #{tpu_custom_call.1} parent=39 // pred_fallthru
          _
        // Predicated region
        $region49: #{tpu_custom_call.1} parent=39 // pred_check
          %p247 = pneg %p86
        $region50: #{tpu_custom_call.1} parent=39 // pred_check_branch
          %249 = sbr.rel (%p247) target = $region52
        $region51: #{tpu_custom_call.1} parent=39 // pred_region
          %250 = dma.done [#allocation8], 3072
        $region52: #{tpu_custom_call.1} parent=39 // pred_fallthru
          _
        %s251 = sand.u32 %s31, 1
        %s252 = scalar_lea.sflag [#allocation5], %s251
        %s253 = sand.u32 %s31, 1
        %s254 = smul.addr %s253, 32
        %s255 = scalar_lea.vmem [#allocation4], %s254
        %p256 = pneg %p44
        %p257 = pneg %p41
        %p258 = pneg %p65
        %p259 = pneg %p62
        %p260 = pneg %p86
        %p261 = pneg %p83
        %p262 = pneg %p107
        %p263 = pneg %p104
        %p264 = pneg %p128
        %p265 = pneg %p125
        %p266 = pneg %p154
        %p267 = pneg %p151
        %s268 = sand.u32 %s141, 1
        %s269 = scalar_lea.sflag [#allocation6], %s268
        %s270 = sand.u32 %s141, 1
        %s271 = smul.addr %s270, 32
        %s272 = scalar_lea.vmem [#allocation10], %s271
        %s273 = smul.u32 2, %s23
        %s274 = smul.u32 2, %s23
        %vm276 = vcmask 1043459
        %vm277 = vsmask.f32 7950
        %vm278 = vmand %vm276, %vm277
        %v279 = vld [vmem:[#allocation2] sm:$0x8]
        %v280 = vsel %vm278, 0, %v279
        %281 = vst [vmem:[#allocation2] sm:$0x8] %v280
        %vm282 = vcmask 1040384
        %vm283 = vsmask.f32 256
        %vm284 = vmand %vm282, %vm283
        %v285 = vld [vmem:[#allocation2 + $0xc] sm:$0x1]
        %v286 = vsel %vm284, 0, %v285
        %287 = vst [vmem:[#allocation2 + $0xc] sm:$0x1] %v286
        %v288 = vld [vmem:[%s238] sm:$0xff]
        %v289 = vld [vmem:[%s238 + $0x8] sm:$0xff]
        %v290 = vpack.c.bf16 %v289, %v288
        %v292 = vunpack.c.l.b16 %v290
        %v293 = vunpack.c.h.b16 %v290
        %v294 = vpack.c.b16 %v292, %v292
        %v295 = vpack.c.b16 %v293, %v293
        %298 = vst [vmem:[#allocation2 + $0x4] sm:$0xf] %v294
        %299 = vst [vmem:[#allocation2 + $0x8] sm:$0xf] %v295
        %v300 = vld [vmem:[#allocation2 + $0xc] sm:$0x8]
        %v301 = vsel %vm278, 0, %v300
        %302 = vst [vmem:[#allocation2 + $0xc] sm:$0x8] %v301
        %v303 = vld [vmem:[#allocation2 + $0x18] sm:$0x1]
        %v304 = vsel %vm284, 0, %v303
        %305 = vst [vmem:[#allocation2 + $0x18] sm:$0x1] %v304
        %s306 = scalar_lea.vmem %s238, 16 [#allocation4]
        %v307 = vld [vmem:[%s306] sm:$0xff]
        %v308 = vld [vmem:[%s306 + $0x8] sm:$0xff]
        %v309 = vpack.c.bf16 %v308, %v307
        %v311 = vunpack.c.l.b16 %v309
        %v312 = vunpack.c.h.b16 %v309
        %v313 = vpack.c.b16 %v311, %v311
        %v314 = vpack.c.b16 %v312, %v312
        %317 = vst [vmem:[#allocation2 + $0x10] sm:$0xf] %v313
        %318 = vst [vmem:[#allocation2 + $0x14] sm:$0xf] %v314
        %v319 = vld [vmem:[#allocation2] sm:$0x8]
        %v320 = vld [vmem:[#allocation2 + $0x4] sm:$0xf]
        %v321 = vld [vmem:[#allocation2 + $0x8] sm:$0xf]
        %v322 = vld [vmem:[#allocation2 + $0xc] sm:$0xf]
        %v323 = vld [vmem:[#allocation2 + $0x10] sm:$0xf]
        %v324 = vld [vmem:[#allocation2 + $0x14] sm:$0xf]
        %v325 = vld [vmem:[#allocation7] sm:$0xf]
        %v326 = vld [vmem:[#allocation7 + $0x4] sm:$0xf]
        %v327 = vld [vmem:[#allocation7 + $0x8] sm:$0xf]
        %v328 = vld [vmem:[#allocation7 + $0xc] sm:$0xf]
        %v329 = vld [vmem:[#allocation7 + $0x10] sm:$0xf]
        %v330 = vld [vmem:[#allocation7 + $0x14] sm:$0xf]
        %v331 = vld [vmem:[#allocation7 + $0x18] sm:$0xf]
        %v332 = vld [vmem:[#allocation7 + $0x1c] sm:$0xf]
        %v333 = vld [vmem:[#allocation7 + $0x20] sm:$0xf]
        %v334 = vld [vmem:[#allocation7 + $0x24] sm:$0xf]
        %v335 = vld [vmem:[#allocation7 + $0x28] sm:$0xf]
        %v336 = vld [vmem:[#allocation7 + $0x2c] sm:$0xf]
        %v337 = vld [vmem:[#allocation7 + $0x30] sm:$0xf]
        %v338 = vld [vmem:[#allocation7 + $0x34] sm:$0xf]
        %v339 = vld [vmem:[#allocation7 + $0x38] sm:$0xf]
        %v340 = vld [vmem:[#allocation7 + $0x3c] sm:$0xf]
        %s341 = scalar_lea.vmem [#allocation7], 64
        %v342 = vld [vmem:[%s341] sm:$0xf]
        %v343 = vld [vmem:[%s341 + $0x4] sm:$0xf]
        %v344 = vld [vmem:[%s341 + $0x8] sm:$0xf]
        %v345 = vld [vmem:[%s341 + $0xc] sm:$0xf]
        %v346 = vld [vmem:[%s341 + $0x10] sm:$0xf]
        %v347 = vld [vmem:[%s341 + $0x14] sm:$0xf]
        %v348 = vld [vmem:[%s341 + $0x18] sm:$0xf]
        %v349 = vld [vmem:[%s341 + $0x1c] sm:$0xf]
        %v350 = vld [vmem:[%s341 + $0x20] sm:$0xf]
        %v351 = vld [vmem:[%s341 + $0x24] sm:$0xf]
        %v352 = vld [vmem:[%s341 + $0x28] sm:$0xf]
        %v353 = vld [vmem:[%s341 + $0x2c] sm:$0xf]
        %v354 = vld [vmem:[%s341 + $0x30] sm:$0xf]
        %v355 = vld [vmem:[%s341 + $0x34] sm:$0xf]
        %v356 = vld [vmem:[%s341 + $0x38] sm:$0xf]
        %v357 = vld [vmem:[%s341 + $0x3c] sm:$0xf]
        %v363 = vunpack.c.l.b16 %v320
        %v364 = vunpack.c.l.b16 %v321
        %v365 = vunpack.c.l.b16 %v322
        %v366 = vunpack.c.l.b16 %v323
        %v367 = vunpack.c.l.b16 %v324
        %v368 = vpack.c.b16 %v364, %v363
        %v369 = vpack.c.b16 %v366, %v365
        %v370 = vpack.c.b16 %v367, %v367
        %v390 = vunpack.c.l.b16 %v342
        %v391 = vunpack.c.l.b16 %v343
        %v392 = vunpack.c.l.b16 %v344
        %v393 = vunpack.c.l.b16 %v345
        %v394 = vunpack.c.l.b16 %v346
        %v395 = vunpack.c.l.b16 %v347
        %v396 = vunpack.c.l.b16 %v348
        %v397 = vunpack.c.l.b16 %v349
        %v398 = vunpack.c.l.b16 %v350
        %v399 = vunpack.c.l.b16 %v351
        %v400 = vunpack.c.l.b16 %v352
        %v401 = vunpack.c.l.b16 %v353
        %v402 = vunpack.c.l.b16 %v354
        %v403 = vunpack.c.l.b16 %v355
        %v404 = vunpack.c.l.b16 %v356
        %v405 = vunpack.c.l.b16 %v357
        %v406 = vpack.c.b16 %v391, %v390
        %v407 = vpack.c.b16 %v393, %v392
        %v408 = vpack.c.b16 %v395, %v394
        %v409 = vpack.c.b16 %v397, %v396
        %v410 = vpack.c.b16 %v399, %v398
        %v411 = vpack.c.b16 %v401, %v400
        %v412 = vpack.c.b16 %v403, %v402
        %v413 = vpack.c.b16 %v405, %v404
        %422 = vmatprep.subr.bf16.mxu0 0
        %423 = vmatpush1.bf16.msra.mxu0 %v413
        %424 = vmatprep.subr.bf16.mxu0 0
        %425 = vmatpush1.bf16.msra.mxu0 %v412
        %426 = vmatprep.subr.bf16.mxu0 0
        %427 = vmatpush1.bf16.msra.mxu0 %v411
        %428 = vmatprep.subr.bf16.mxu0 0
        %429 = vmatpush1.bf16.msra.mxu0 %v410
        %430 = vmatprep.subr.bf16.mxu0 0
        %431 = vmatpush1.bf16.msra.mxu0 %v409
        %432 = vmatprep.subr.bf16.mxu0 0
        %433 = vmatpush1.bf16.msra.mxu0 %v408
        %434 = vmatprep.subr.bf16.mxu0 0
        %435 = vmatpush1.bf16.msra.mxu0 %v407
        %436 = vmatprep.subr.bf16.mxu0 0
        %437 = vmatpush1.bf16.msra.mxu0 %v406
        %438 = vmatprep.subr.bf16.mxu0 0
        %439 = vmatpush2.bf16.msra.mxu0 0
        %440 = vmatprep.subr.bf16.mxu0 0
        %441 = vmatpush2.bf16.msra.mxu0 0
        %442 = vmatprep.subr.bf16.mxu0 0
        %443 = vmatpush2.bf16.msra.mxu0 0
        %444 = vmatprep.subr.bf16.mxu0 0
        %445 = vmatpush2.bf16.msra.mxu0 0
        %446 = vmatprep.subr.bf16.mxu0 0
        %447 = vmatpush2.bf16.msra.mxu0 0
        %448 = vmatprep.subr.bf16.mxu0 0
        %449 = vmatpush2.bf16.msra.mxu0 0
        %450 = vmatprep.subr.bf16.mxu0 0
        %451 = vmatpush2.bf16.msra.mxu0 0
        %452 = vmatprep.subr.bf16.mxu0 0
        %453 = vmatpush2.bf16.msra.mxu0 0
        %454 = vmatprep.mubr.bf16.mxu0 0
        %455 = vmatmul.mubr.bf16.gmra.mxu0 %v368
        %v456 = vpop.f32.mrf.mxu0
        %v457 = vadd.f32 0.0, %v456
        %v458 = vpop.f32.mrf.mxu0
        %v459 = vpop.f32.mrf.mxu0
        %v460 = vadd.f32 0.0, %v459
        %v461 = vpop.f32.mrf.mxu0
        %462 = vmatprep.mubr.bf16.mxu0 0
        %463 = vmatmul.mubr.bf16.gmra.mxu0 %v369
        %v464 = vpop.f32.mrf.mxu0
        %v465 = vpop.f32.mrf.mxu0
        %v466 = vpop.f32.mrf.mxu0
        %v467 = vadd.f32 0.0, %v466
        %v468 = vpop.f32.mrf.mxu0
        %469 = vmatprep.mubr.bf16.mxu0 0
        %470 = vmatmul.mubr.bf16.gmra.mxu0 %v370
        %v471 = vpop.f32.mrf.mxu0
        %v472 = vadd.f32 0.0, %v471
        %v473 = vpop.f32.mrf.mxu0
        %v474 = vpop.f32.mrf.mxu0
        %v475 = vpop.f32.mrf.mxu0
        %476 = vdwg.mxu0
        %v478 = vunpack.c.l.b16 %v319
        %v479 = vpack.c.b16 %v363, %v478
        %v480 = vpack.c.b16 %v365, %v364
        %v481 = vpack.c.b16 %v367, %v366
        %vm482 = vsmask.f32 4352
        %v484 = vshrl.u32 %v479, 16
        %v486 = vrot.slane %v484, 3
        %v487 = vshll.u32 %v479, 16
        %v489 = vrot.slane %v487, 4
        %v490 = vor.u32 %v486, %v489
        %v492 = vshrl.u32 %v480, 16
        %v494 = vrot.slane %v492, 3
        %v495 = vshll.u32 %v480, 16
        %v497 = vrot.slane %v495, 4
        %v498 = vor.u32 %v494, %v497
        %v499 = vsel %vm482, %v490, %v498
        %v501 = vshrl.u32 %v481, 16
        %v503 = vrot.slane %v501, 3
        %v504 = vshll.u32 %v481, 16
        %v506 = vrot.slane %v504, 4
        %v507 = vor.u32 %v503, %v506
        %v508 = vsel %vm482, %v498, %v507
        %v528 = vunpack.c.l.b16 %v325
        %v529 = vunpack.c.l.b16 %v326
        %v530 = vunpack.c.l.b16 %v327
        %v531 = vunpack.c.l.b16 %v328
        %v532 = vunpack.c.l.b16 %v329
        %v533 = vunpack.c.l.b16 %v330
        %v534 = vunpack.c.l.b16 %v331
        %v535 = vunpack.c.l.b16 %v332
        %v536 = vunpack.c.l.b16 %v333
        %v537 = vunpack.c.l.b16 %v334
        %v538 = vunpack.c.l.b16 %v335
        %v539 = vunpack.c.l.b16 %v336
        %v540 = vunpack.c.l.b16 %v337
        %v541 = vunpack.c.l.b16 %v338
        %v542 = vunpack.c.l.b16 %v339
        %v543 = vunpack.c.l.b16 %v340
        %v544 = vpack.c.b16 %v529, %v528
        %v545 = vpack.c.b16 %v531, %v530
        %v546 = vpack.c.b16 %v533, %v532
        %v547 = vpack.c.b16 %v535, %v534
        %v548 = vpack.c.b16 %v537, %v536
        %v549 = vpack.c.b16 %v539, %v538
        %v550 = vpack.c.b16 %v541, %v540
        %v551 = vpack.c.b16 %v543, %v542
        %560 = vmatprep.subr.bf16.mxu0 0
        %561 = vmatpush1.bf16.msra.mxu0 %v551
        %562 = vmatprep.subr.bf16.mxu0 0
        %563 = vmatpush1.bf16.msra.mxu0 %v550
        %564 = vmatprep.subr.bf16.mxu0 0
        %565 = vmatpush1.bf16.msra.mxu0 %v549
        %566 = vmatprep.subr.bf16.mxu0 0
        %567 = vmatpush1.bf16.msra.mxu0 %v548
        %568 = vmatprep.subr.bf16.mxu0 0
        %569 = vmatpush1.bf16.msra.mxu0 %v547
        %570 = vmatprep.subr.bf16.mxu0 0
        %571 = vmatpush1.bf16.msra.mxu0 %v546
        %572 = vmatprep.subr.bf16.mxu0 0
        %573 = vmatpush1.bf16.msra.mxu0 %v545
        %574 = vmatprep.subr.bf16.mxu0 0
        %575 = vmatpush1.bf16.msra.mxu0 %v544
        %576 = vmatprep.subr.bf16.mxu0 0
        %577 = vmatpush2.bf16.msra.mxu0 0
        %578 = vmatprep.subr.bf16.mxu0 0
        %579 = vmatpush2.bf16.msra.mxu0 0
        %580 = vmatprep.subr.bf16.mxu0 0
        %581 = vmatpush2.bf16.msra.mxu0 0
        %582 = vmatprep.subr.bf16.mxu0 0
        %583 = vmatpush2.bf16.msra.mxu0 0
        %584 = vmatprep.subr.bf16.mxu0 0
        %585 = vmatpush2.bf16.msra.mxu0 0
        %586 = vmatprep.subr.bf16.mxu0 0
        %587 = vmatpush2.bf16.msra.mxu0 0
        %588 = vmatprep.subr.bf16.mxu0 0
        %589 = vmatpush2.bf16.msra.mxu0 0
        %590 = vmatprep.subr.bf16.mxu0 0
        %591 = vmatpush2.bf16.msra.mxu0 0
        %592 = vmatprep.mubr.bf16.mxu0 0
        %593 = vmatmul.mubr.bf16.gmra.mxu0 %v499
        %v594 = vpop.f32.mrf.mxu0
        %v595 = vadd.f32 %v457, %v594
        %v596 = vpop.f32.mrf.mxu0
        %v597 = vpop.f32.mrf.mxu0
        %v598 = vadd.f32 %v460, %v597
        %v599 = vpop.f32.mrf.mxu0
        %600 = vmatprep.mubr.bf16.mxu0 0
        %601 = vmatmul.mubr.bf16.gmra.mxu0 %v508
        %v602 = vpop.f32.mrf.mxu0
        %v603 = vpop.f32.mrf.mxu0
        %v604 = vpop.f32.mrf.mxu0
        %v605 = vadd.f32 %v467, %v604
        %v606 = vpop.f32.mrf.mxu0
        %607 = vmatprep.mubr.bf16.mxu0 0
        %608 = vmatmul.mubr.bf16.gmra.mxu0 %v507
        %v609 = vpop.f32.mrf.mxu0
        %v610 = vadd.f32 %v472, %v609
        %v611 = vpop.f32.mrf.mxu0
        %v612 = vpop.f32.mrf.mxu0
        %v613 = vpop.f32.mrf.mxu0
        %614 = vdwg.mxu0
        %v615 = vld [vmem:[#allocation2 + $0x4] sm:$0xf]
        %v616 = vld [vmem:[#allocation2 + $0x8] sm:$0xf]
        %v617 = vld [vmem:[#allocation2 + $0xc] sm:$0xf]
        %v618 = vld [vmem:[#allocation2 + $0x10] sm:$0xf]
        %v619 = vld [vmem:[#allocation2 + $0x14] sm:$0xf]
        %v620 = vld [vmem:[#allocation2 + $0x18] sm:$0x1]
        %s621 = scalar_lea.vmem [#allocation7], 128
        %v622 = vld [vmem:[%s621] sm:$0xf]
        %v623 = vld [vmem:[%s621 + $0x4] sm:$0xf]
        %v624 = vld [vmem:[%s621 + $0x8] sm:$0xf]
        %v625 = vld [vmem:[%s621 + $0xc] sm:$0xf]
        %v626 = vld [vmem:[%s621 + $0x10] sm:$0xf]
        %v627 = vld [vmem:[%s621 + $0x14] sm:$0xf]
        %v628 = vld [vmem:[%s621 + $0x18] sm:$0xf]
        %v629 = vld [vmem:[%s621 + $0x1c] sm:$0xf]
        %v630 = vld [vmem:[%s621 + $0x20] sm:$0xf]
        %v631 = vld [vmem:[%s621 + $0x24] sm:$0xf]
        %v632 = vld [vmem:[%s621 + $0x28] sm:$0xf]
        %v633 = vld [vmem:[%s621 + $0x2c] sm:$0xf]
        %v634 = vld [vmem:[%s621 + $0x30] sm:$0xf]
        %v635 = vld [vmem:[%s621 + $0x34] sm:$0xf]
        %v636 = vld [vmem:[%s621 + $0x38] sm:$0xf]
        %v637 = vld [vmem:[%s621 + $0x3c] sm:$0xf]
        %v644 = vunpack.c.l.b16 %v615
        %v645 = vunpack.c.l.b16 %v616
        %v646 = vunpack.c.l.b16 %v617
        %v647 = vunpack.c.l.b16 %v618
        %v648 = vunpack.c.l.b16 %v619
        %v649 = vunpack.c.l.b16 %v620
        %v650 = vpack.c.b16 %v645, %v644
        %v651 = vpack.c.b16 %v647, %v646
        %v652 = vpack.c.b16 %v649, %v648
        %vm653 = vsmask.f32 7424
        %v655 = vshrl.u32 %v650, 16
        %v657 = vshll.u32 %v650, 16
        %v659 = vrot.slane %v657, 1
        %v660 = vor.u32 %v655, %v659
        %v662 = vshll.u32 %v651, 16
        %v664 = vrot.slane %v662, 1
        %v665 = vsel %vm653, %v660, %v664
        %v666 = vshrl.u32 %v651, 16
        %v668 = vor.u32 %v666, %v664
        %v670 = vshll.u32 %v652, 16
        %v672 = vrot.slane %v670, 1
        %v673 = vsel %vm653, %v668, %v672
        %v674 = vshrl.u32 %v652, 16
        %v676 = vor.u32 %v674, %v672
        %v696 = vunpack.c.l.b16 %v622
        %v697 = vunpack.c.l.b16 %v623
        %v698 = vunpack.c.l.b16 %v624
        %v699 = vunpack.c.l.b16 %v625
        %v700 = vunpack.c.l.b16 %v626
        %v701 = vunpack.c.l.b16 %v627
        %v702 = vunpack.c.l.b16 %v628
        %v703 = vunpack.c.l.b16 %v629
        %v704 = vunpack.c.l.b16 %v630
        %v705 = vunpack.c.l.b16 %v631
        %v706 = vunpack.c.l.b16 %v632
        %v707 = vunpack.c.l.b16 %v633
        %v708 = vunpack.c.l.b16 %v634
        %v709 = vunpack.c.l.b16 %v635
        %v710 = vunpack.c.l.b16 %v636
        %v711 = vunpack.c.l.b16 %v637
        %v712 = vpack.c.b16 %v697, %v696
        %v713 = vpack.c.b16 %v699, %v698
        %v714 = vpack.c.b16 %v701, %v700
        %v715 = vpack.c.b16 %v703, %v702
        %v716 = vpack.c.b16 %v705, %v704
        %v717 = vpack.c.b16 %v707, %v706
        %v718 = vpack.c.b16 %v709, %v708
        %v719 = vpack.c.b16 %v711, %v710
        %728 = vmatprep.subr.bf16.mxu0 0
        %729 = vmatpush1.bf16.msra.mxu0 %v719
        %730 = vmatprep.subr.bf16.mxu0 0
        %731 = vmatpush1.bf16.msra.mxu0 %v718
        %732 = vmatprep.subr.bf16.mxu0 0
        %733 = vmatpush1.bf16.msra.mxu0 %v717
        %734 = vmatprep.subr.bf16.mxu0 0
        %735 = vmatpush1.bf16.msra.mxu0 %v716
        %736 = vmatprep.subr.bf16.mxu0 0
        %737 = vmatpush1.bf16.msra.mxu0 %v715
        %738 = vmatprep.subr.bf16.mxu0 0
        %739 = vmatpush1.bf16.msra.mxu0 %v714
        %740 = vmatprep.subr.bf16.mxu0 0
        %741 = vmatpush1.bf16.msra.mxu0 %v713
        %742 = vmatprep.subr.bf16.mxu0 0
        %743 = vmatpush1.bf16.msra.mxu0 %v712
        %744 = vmatprep.subr.bf16.mxu0 0
        %745 = vmatpush2.bf16.msra.mxu0 0
        %746 = vmatprep.subr.bf16.mxu0 0
        %747 = vmatpush2.bf16.msra.mxu0 0
        %748 = vmatprep.subr.bf16.mxu0 0
        %749 = vmatpush2.bf16.msra.mxu0 0
        %750 = vmatprep.subr.bf16.mxu0 0
        %751 = vmatpush2.bf16.msra.mxu0 0
        %752 = vmatprep.subr.bf16.mxu0 0
        %753 = vmatpush2.bf16.msra.mxu0 0
        %754 = vmatprep.subr.bf16.mxu0 0
        %755 = vmatpush2.bf16.msra.mxu0 0
        %756 = vmatprep.subr.bf16.mxu0 0
        %757 = vmatpush2.bf16.msra.mxu0 0
        %758 = vmatprep.subr.bf16.mxu0 0
        %759 = vmatpush2.bf16.msra.mxu0 0
        %760 = vmatprep.mubr.bf16.mxu0 0
        %761 = vmatmul.mubr.bf16.gmra.mxu0 %v665
        %v762 = vpop.f32.mrf.mxu0
        %v763 = vadd.f32 0.0, %v762
        %v764 = vpop.f32.mrf.mxu0
        %v765 = vpop.f32.mrf.mxu0
        %v766 = vadd.f32 0.0, %v765
        %v767 = vpop.f32.mrf.mxu0
        %768 = vmatprep.mubr.bf16.mxu0 0
        %769 = vmatmul.mubr.bf16.gmra.mxu0 %v673
        %v770 = vpop.f32.mrf.mxu0
        %v771 = vpop.f32.mrf.mxu0
        %v772 = vpop.f32.mrf.mxu0
        %v773 = vadd.f32 0.0, %v772
        %v774 = vpop.f32.mrf.mxu0
        %775 = vmatprep.mubr.bf16.mxu0 0
        %776 = vmatmul.mubr.bf16.gmra.mxu0 %v676
        %v777 = vpop.f32.mrf.mxu0
        %v778 = vadd.f32 0.0, %v777
        %v779 = vpop.f32.mrf.mxu0
        %v780 = vpop.f32.mrf.mxu0
        %v781 = vpop.f32.mrf.mxu0
        %782 = vdwg.mxu0
        %v783 = vadd.f32 %v595, %v763
        %v784 = vadd.f32 %v598, %v766
        %v785 = vadd.f32 %v605, %v773
        %v786 = vadd.f32 %v610, %v778
        %v787 = vld [vmem:[%s3] sm:$0x1]
        %v789 = vlaneseq
        %v790 = vshrl.u32 %v789, 7
        %v791 = vsub.s32 0, %v790
        %v792 = vrot.slane %v787, %v791
        %v794 = vadd.f32 %v783, %v792
        %v795 = vadd.f32 %v784, %v792
        %v796 = vadd.f32 %v785, %v792
        %v797 = vadd.f32 %v786, %v792
        %v798 = vmax.f32 %v794, 0.0
        %v799 = vmax.f32 %v795, 0.0
        %v800 = vmax.f32 %v796, 0.0
        %v801 = vmax.f32 %v797, 0.0
        %v802 = vld [vmem:[#allocation3] sm:$0x8]
        %v803 = vsel %vm278, 0, %v802
        %804 = vst [vmem:[#allocation3] sm:$0x8] %v803
        %v805 = vld [vmem:[#allocation3 + $0xc] sm:$0x1]
        %v806 = vsel %vm284, 0, %v805
        %807 = vst [vmem:[#allocation3 + $0xc] sm:$0x1] %v806
        %v808 = vpack.c.bf16 %v799, %v798
        %v810 = vunpack.c.l.b16 %v808
        %v811 = vunpack.c.h.b16 %v808
        %v812 = vpack.c.b16 %v810, %v810
        %v813 = vpack.c.b16 %v811, %v811
        %816 = vst [vmem:[#allocation3 + $0x4] sm:$0xf] %v812
        %817 = vst [vmem:[#allocation3 + $0x8] sm:$0xf] %v813
        %v818 = vld [vmem:[#allocation3 + $0xc] sm:$0x8]
        %v819 = vsel %vm278, 0, %v818
        %820 = vst [vmem:[#allocation3 + $0xc] sm:$0x8] %v819
        %v821 = vld [vmem:[#allocation3 + $0x18] sm:$0x1]
        %v822 = vsel %vm284, 0, %v821
        %823 = vst [vmem:[#allocation3 + $0x18] sm:$0x1] %v822
        %v824 = vpack.c.bf16 %v801, %v800
        %v826 = vunpack.c.l.b16 %v824
        %v827 = vunpack.c.h.b16 %v824
        %v828 = vpack.c.b16 %v826, %v826
        %v829 = vpack.c.b16 %v827, %v827
        %832 = vst [vmem:[#allocation3 + $0x10] sm:$0xf] %v828
        %833 = vst [vmem:[#allocation3 + $0x14] sm:$0xf] %v829
        %v834 = vld [vmem:[#allocation3] sm:$0x8]
        %v835 = vld [vmem:[#allocation3 + $0x4] sm:$0xf]
        %v836 = vld [vmem:[#allocation3 + $0x8] sm:$0xf]
        %v837 = vld [vmem:[#allocation3 + $0xc] sm:$0xf]
        %v838 = vld [vmem:[#allocation3 + $0x10] sm:$0xf]
        %v839 = vld [vmem:[#allocation3 + $0x14] sm:$0xf]
        %v840 = vld [vmem:[#allocation9] sm:$0xf]
        %v841 = vld [vmem:[#allocation9 + $0x4] sm:$0xf]
        %v842 = vld [vmem:[#allocation9 + $0x8] sm:$0xf]
        %v843 = vld [vmem:[#allocation9 + $0xc] sm:$0xf]
        %v844 = vld [vmem:[#allocation9 + $0x10] sm:$0xf]
        %v845 = vld [vmem:[#allocation9 + $0x14] sm:$0xf]
        %v846 = vld [vmem:[#allocation9 + $0x18] sm:$0xf]
        %v847 = vld [vmem:[#allocation9 + $0x1c] sm:$0xf]
        %v848 = vld [vmem:[#allocation9 + $0x20] sm:$0xf]
        %v849 = vld [vmem:[#allocation9 + $0x24] sm:$0xf]
        %v850 = vld [vmem:[#allocation9 + $0x28] sm:$0xf]
        %v851 = vld [vmem:[#allocation9 + $0x2c] sm:$0xf]
        %v852 = vld [vmem:[#allocation9 + $0x30] sm:$0xf]
        %v853 = vld [vmem:[#allocation9 + $0x34] sm:$0xf]
        %v854 = vld [vmem:[#allocation9 + $0x38] sm:$0xf]
        %v855 = vld [vmem:[#allocation9 + $0x3c] sm:$0xf]
        %s856 = scalar_lea.vmem [#allocation9], 64
        %v857 = vld [vmem:[%s856] sm:$0xf]
        %v858 = vld [vmem:[%s856 + $0x4] sm:$0xf]
        %v859 = vld [vmem:[%s856 + $0x8] sm:$0xf]
        %v860 = vld [vmem:[%s856 + $0xc] sm:$0xf]
        %v861 = vld [vmem:[%s856 + $0x10] sm:$0xf]
        %v862 = vld [vmem:[%s856 + $0x14] sm:$0xf]
        %v863 = vld [vmem:[%s856 + $0x18] sm:$0xf]
        %v864 = vld [vmem:[%s856 + $0x1c] sm:$0xf]
        %v865 = vld [vmem:[%s856 + $0x20] sm:$0xf]
        %v866 = vld [vmem:[%s856 + $0x24] sm:$0xf]
        %v867 = vld [vmem:[%s856 + $0x28] sm:$0xf]
        %v868 = vld [vmem:[%s856 + $0x2c] sm:$0xf]
        %v869 = vld [vmem:[%s856 + $0x30] sm:$0xf]
        %v870 = vld [vmem:[%s856 + $0x34] sm:$0xf]
        %v871 = vld [vmem:[%s856 + $0x38] sm:$0xf]
        %v872 = vld [vmem:[%s856 + $0x3c] sm:$0xf]
        %v878 = vunpack.c.l.b16 %v835
        %v879 = vunpack.c.l.b16 %v836
        %v880 = vunpack.c.l.b16 %v837
        %v881 = vunpack.c.l.b16 %v838
        %v882 = vunpack.c.l.b16 %v839
        %v883 = vpack.c.b16 %v879, %v878
        %v884 = vpack.c.b16 %v881, %v880
        %v885 = vpack.c.b16 %v882, %v882
        %v905 = vunpack.c.l.b16 %v857
        %v906 = vunpack.c.l.b16 %v858
        %v907 = vunpack.c.l.b16 %v859
        %v908 = vunpack.c.l.b16 %v860
        %v909 = vunpack.c.l.b16 %v861
        %v910 = vunpack.c.l.b16 %v862
        %v911 = vunpack.c.l.b16 %v863
        %v912 = vunpack.c.l.b16 %v864
        %v913 = vunpack.c.l.b16 %v865
        %v914 = vunpack.c.l.b16 %v866
        %v915 = vunpack.c.l.b16 %v867
        %v916 = vunpack.c.l.b16 %v868
        %v917 = vunpack.c.l.b16 %v869
        %v918 = vunpack.c.l.b16 %v870
        %v919 = vunpack.c.l.b16 %v871
        %v920 = vunpack.c.l.b16 %v872
        %v921 = vpack.c.b16 %v906, %v905
        %v922 = vpack.c.b16 %v908, %v907
        %v923 = vpack.c.b16 %v910, %v909
        %v924 = vpack.c.b16 %v912, %v911
        %v925 = vpack.c.b16 %v914, %v913
        %v926 = vpack.c.b16 %v916, %v915
        %v927 = vpack.c.b16 %v918, %v917
        %v928 = vpack.c.b16 %v920, %v919
        %937 = vmatprep.subr.bf16.mxu0 0
        %938 = vmatpush1.bf16.msra.mxu0 %v928
        %939 = vmatprep.subr.bf16.mxu0 0
        %940 = vmatpush1.bf16.msra.mxu0 %v927
        %941 = vmatprep.subr.bf16.mxu0 0
        %942 = vmatpush1.bf16.msra.mxu0 %v926
        %943 = vmatprep.subr.bf16.mxu0 0
        %944 = vmatpush1.bf16.msra.mxu0 %v925
        %945 = vmatprep.subr.bf16.mxu0 0
        %946 = vmatpush1.bf16.msra.mxu0 %v924
        %947 = vmatprep.subr.bf16.mxu0 0
        %948 = vmatpush1.bf16.msra.mxu0 %v923
        %949 = vmatprep.subr.bf16.mxu0 0
        %950 = vmatpush1.bf16.msra.mxu0 %v922
        %951 = vmatprep.subr.bf16.mxu0 0
        %952 = vmatpush1.bf16.msra.mxu0 %v921
        %953 = vmatprep.subr.bf16.mxu0 0
        %954 = vmatpush2.bf16.msra.mxu0 0
        %955 = vmatprep.subr.bf16.mxu0 0
        %956 = vmatpush2.bf16.msra.mxu0 0
        %957 = vmatprep.subr.bf16.mxu0 0
        %958 = vmatpush2.bf16.msra.mxu0 0
        %959 = vmatprep.subr.bf16.mxu0 0
        %960 = vmatpush2.bf16.msra.mxu0 0
        %961 = vmatprep.subr.bf16.mxu0 0
        %962 = vmatpush2.bf16.msra.mxu0 0
        %963 = vmatprep.subr.bf16.mxu0 0
        %964 = vmatpush2.bf16.msra.mxu0 0
        %965 = vmatprep.subr.bf16.mxu0 0
        %966 = vmatpush2.bf16.msra.mxu0 0
        %967 = vmatprep.subr.bf16.mxu0 0
        %968 = vmatpush2.bf16.msra.mxu0 0
        %969 = vmatprep.mubr.bf16.mxu0 0
        %970 = vmatmul.mubr.bf16.gmra.mxu0 %v883
        %v971 = vpop.f32.mrf.mxu0
        %v972 = vadd.f32 0.0, %v971
        %v973 = vpop.f32.mrf.mxu0
        %v974 = vpop.f32.mrf.mxu0
        %v975 = vadd.f32 0.0, %v974
        %v976 = vpop.f32.mrf.mxu0
        %977 = vmatprep.mubr.bf16.mxu0 0
        %978 = vmatmul.mubr.bf16.gmra.mxu0 %v884
        %v979 = vpop.f32.mrf.mxu0
        %v980 = vpop.f32.mrf.mxu0
        %v981 = vpop.f32.mrf.mxu0
        %v982 = vadd.f32 0.0, %v981
        %v983 = vpop.f32.mrf.mxu0
        %984 = vmatprep.mubr.bf16.mxu0 0
        %985 = vmatmul.mubr.bf16.gmra.mxu0 %v885
        %v986 = vpop.f32.mrf.mxu0
        %v987 = vadd.f32 0.0, %v986
        %v988 = vpop.f32.mrf.mxu0
        %v989 = vpop.f32.mrf.mxu0
        %v990 = vpop.f32.mrf.mxu0
        %991 = vdwg.mxu0
        %v993 = vunpack.c.l.b16 %v834
        %v994 = vpack.c.b16 %v878, %v993
        %v995 = vpack.c.b16 %v880, %v879
        %v996 = vpack.c.b16 %v882, %v881
        %v998 = vshrl.u32 %v994, 16
        %v1000 = vrot.slane %v998, 3
        %v1001 = vshll.u32 %v994, 16
        %v1003 = vrot.slane %v1001, 4
        %v1004 = vor.u32 %v1000, %v1003
        %v1006 = vshrl.u32 %v995, 16
        %v1008 = vrot.slane %v1006, 3
        %v1009 = vshll.u32 %v995, 16
        %v1011 = vrot.slane %v1009, 4
        %v1012 = vor.u32 %v1008, %v1011
        %v1013 = vsel %vm482, %v1004, %v1012
        %v1015 = vshrl.u32 %v996, 16
        %v1017 = vrot.slane %v1015, 3
        %v1018 = vshll.u32 %v996, 16
        %v1020 = vrot.slane %v1018, 4
        %v1021 = vor.u32 %v1017, %v1020
        %v1022 = vsel %vm482, %v1012, %v1021
        %v1042 = vunpack.c.l.b16 %v840
        %v1043 = vunpack.c.l.b16 %v841
        %v1044 = vunpack.c.l.b16 %v842
        %v1045 = vunpack.c.l.b16 %v843
        %v1046 = vunpack.c.l.b16 %v844
        %v1047 = vunpack.c.l.b16 %v845
        %v1048 = vunpack.c.l.b16 %v846
        %v1049 = vunpack.c.l.b16 %v847
        %v1050 = vunpack.c.l.b16 %v848
        %v1051 = vunpack.c.l.b16 %v849
        %v1052 = vunpack.c.l.b16 %v850
        %v1053 = vunpack.c.l.b16 %v851
        %v1054 = vunpack.c.l.b16 %v852
        %v1055 = vunpack.c.l.b16 %v853
        %v1056 = vunpack.c.l.b16 %v854
        %v1057 = vunpack.c.l.b16 %v855
        %v1058 = vpack.c.b16 %v1043, %v1042
        %v1059 = vpack.c.b16 %v1045, %v1044
        %v1060 = vpack.c.b16 %v1047, %v1046
        %v1061 = vpack.c.b16 %v1049, %v1048
        %v1062 = vpack.c.b16 %v1051, %v1050
        %v1063 = vpack.c.b16 %v1053, %v1052
        %v1064 = vpack.c.b16 %v1055, %v1054
        %v1065 = vpack.c.b16 %v1057, %v1056
        %1074 = vmatprep.subr.bf16.mxu0 0
        %1075 = vmatpush1.bf16.msra.mxu0 %v1065
        %1076 = vmatprep.subr.bf16.mxu0 0
        %1077 = vmatpush1.bf16.msra.mxu0 %v1064
        %1078 = vmatprep.subr.bf16.mxu0 0
        %1079 = vmatpush1.bf16.msra.mxu0 %v1063
        %1080 = vmatprep.subr.bf16.mxu0 0
        %1081 = vmatpush1.bf16.msra.mxu0 %v1062
        %1082 = vmatprep.subr.bf16.mxu0 0
        %1083 = vmatpush1.bf16.msra.mxu0 %v1061
        %1084 = vmatprep.subr.bf16.mxu0 0
        %1085 = vmatpush1.bf16.msra.mxu0 %v1060
        %1086 = vmatprep.subr.bf16.mxu0 0
        %1087 = vmatpush1.bf16.msra.mxu0 %v1059
        %1088 = vmatprep.subr.bf16.mxu0 0
        %1089 = vmatpush1.bf16.msra.mxu0 %v1058
        %1090 = vmatprep.subr.bf16.mxu0 0
        %1091 = vmatpush2.bf16.msra.mxu0 0
        %1092 = vmatprep.subr.bf16.mxu0 0
        %1093 = vmatpush2.bf16.msra.mxu0 0
        %1094 = vmatprep.subr.bf16.mxu0 0
        %1095 = vmatpush2.bf16.msra.mxu0 0
        %1096 = vmatprep.subr.bf16.mxu0 0
        %1097 = vmatpush2.bf16.msra.mxu0 0
        %1098 = vmatprep.subr.bf16.mxu0 0
        %1099 = vmatpush2.bf16.msra.mxu0 0
        %1100 = vmatprep.subr.bf16.mxu0 0
        %1101 = vmatpush2.bf16.msra.mxu0 0
        %1102 = vmatprep.subr.bf16.mxu0 0
        %1103 = vmatpush2.bf16.msra.mxu0 0
        %1104 = vmatprep.subr.bf16.mxu0 0
        %1105 = vmatpush2.bf16.msra.mxu0 0
        %1106 = vmatprep.mubr.bf16.mxu0 0
        %1107 = vmatmul.mubr.bf16.gmra.mxu0 %v1013
        %v1108 = vpop.f32.mrf.mxu0
        %v1109 = vadd.f32 %v972, %v1108
        %v1110 = vpop.f32.mrf.mxu0
        %v1111 = vpop.f32.mrf.mxu0
        %v1112 = vadd.f32 %v975, %v1111
        %v1113 = vpop.f32.mrf.mxu0
        %1114 = vmatprep.mubr.bf16.mxu0 0
        %1115 = vmatmul.mubr.bf16.gmra.mxu0 %v1022
        %v1116 = vpop.f32.mrf.mxu0
        %v1117 = vpop.f32.mrf.mxu0
        %v1118 = vpop.f32.mrf.mxu0
        %v1119 = vadd.f32 %v982, %v1118
        %v1120 = vpop.f32.mrf.mxu0
        %1121 = vmatprep.mubr.bf16.mxu0 0
        %1122 = vmatmul.mubr.bf16.gmra.mxu0 %v1021
        %v1123 = vpop.f32.mrf.mxu0
        %v1124 = vadd.f32 %v987, %v1123
        %v1125 = vpop.f32.mrf.mxu0
        %v1126 = vpop.f32.mrf.mxu0
        %v1127 = vpop.f32.mrf.mxu0
        %1128 = vdwg.mxu0
        %v1129 = vld [vmem:[#allocation3 + $0x4] sm:$0xf]
        %v1130 = vld [vmem:[#allocation3 + $0x8] sm:$0xf]
        %v1131 = vld [vmem:[#allocation3 + $0xc] sm:$0xf]
        %v1132 = vld [vmem:[#allocation3 + $0x10] sm:$0xf]
        %v1133 = vld [vmem:[#allocation3 + $0x14] sm:$0xf]
        %v1134 = vld [vmem:[#allocation3 + $0x18] sm:$0x1]
        %s1135 = scalar_lea.vmem [#allocation9], 128
        %v1136 = vld [vmem:[%s1135] sm:$0xf]
        %v1137 = vld [vmem:[%s1135 + $0x4] sm:$0xf]
        %v1138 = vld [vmem:[%s1135 + $0x8] sm:$0xf]
        %v1139 = vld [vmem:[%s1135 + $0xc] sm:$0xf]
        %v1140 = vld [vmem:[%s1135 + $0x10] sm:$0xf]
        %v1141 = vld [vmem:[%s1135 + $0x14] sm:$0xf]
        %v1142 = vld [vmem:[%s1135 + $0x18] sm:$0xf]
        %v1143 = vld [vmem:[%s1135 + $0x1c] sm:$0xf]
        %v1144 = vld [vmem:[%s1135 + $0x20] sm:$0xf]
        %v1145 = vld [vmem:[%s1135 + $0x24] sm:$0xf]
        %v1146 = vld [vmem:[%s1135 + $0x28] sm:$0xf]
        %v1147 = vld [vmem:[%s1135 + $0x2c] sm:$0xf]
        %v1148 = vld [vmem:[%s1135 + $0x30] sm:$0xf]
        %v1149 = vld [vmem:[%s1135 + $0x34] sm:$0xf]
        %v1150 = vld [vmem:[%s1135 + $0x38] sm:$0xf]
        %v1151 = vld [vmem:[%s1135 + $0x3c] sm:$0xf]
        %v1158 = vunpack.c.l.b16 %v1129
        %v1159 = vunpack.c.l.b16 %v1130
        %v1160 = vunpack.c.l.b16 %v1131
        %v1161 = vunpack.c.l.b16 %v1132
        %v1162 = vunpack.c.l.b16 %v1133
        %v1163 = vunpack.c.l.b16 %v1134
        %v1164 = vpack.c.b16 %v1159, %v1158
        %v1165 = vpack.c.b16 %v1161, %v1160
        %v1166 = vpack.c.b16 %v1163, %v1162
        %v1168 = vshrl.u32 %v1164, 16
        %v1170 = vshll.u32 %v1164, 16
        %v1172 = vrot.slane %v1170, 1
        %v1173 = vor.u32 %v1168, %v1172
        %v1175 = vshll.u32 %v1165, 16
        %v1177 = vrot.slane %v1175, 1
        %v1178 = vsel %vm653, %v1173, %v1177
        %v1179 = vshrl.u32 %v1165, 16
        %v1181 = vor.u32 %v1179, %v1177
        %v1183 = vshll.u32 %v1166, 16
        %v1185 = vrot.slane %v1183, 1
        %v1186 = vsel %vm653, %v1181, %v1185
        %v1187 = vshrl.u32 %v1166, 16
        %v1189 = vor.u32 %v1187, %v1185
        %v1209 = vunpack.c.l.b16 %v1136
        %v1210 = vunpack.c.l.b16 %v1137
        %v1211 = vunpack.c.l.b16 %v1138
        %v1212 = vunpack.c.l.b16 %v1139
        %v1213 = vunpack.c.l.b16 %v1140
        %v1214 = vunpack.c.l.b16 %v1141
        %v1215 = vunpack.c.l.b16 %v1142
        %v1216 = vunpack.c.l.b16 %v1143
        %v1217 = vunpack.c.l.b16 %v1144
        %v1218 = vunpack.c.l.b16 %v1145
        %v1219 = vunpack.c.l.b16 %v1146
        %v1220 = vunpack.c.l.b16 %v1147
        %v1221 = vunpack.c.l.b16 %v1148
        %v1222 = vunpack.c.l.b16 %v1149
        %v1223 = vunpack.c.l.b16 %v1150
        %v1224 = vunpack.c.l.b16 %v1151
        %v1225 = vpack.c.b16 %v1210, %v1209
        %v1226 = vpack.c.b16 %v1212, %v1211
        %v1227 = vpack.c.b16 %v1214, %v1213
        %v1228 = vpack.c.b16 %v1216, %v1215
        %v1229 = vpack.c.b16 %v1218, %v1217
        %v1230 = vpack.c.b16 %v1220, %v1219
        %v1231 = vpack.c.b16 %v1222, %v1221
        %v1232 = vpack.c.b16 %v1224, %v1223
        %1241 = vmatprep.subr.bf16.mxu0 0
        %1242 = vmatpush1.bf16.msra.mxu0 %v1232
        %1243 = vmatprep.subr.bf16.mxu0 0
        %1244 = vmatpush1.bf16.msra.mxu0 %v1231
        %1245 = vmatprep.subr.bf16.mxu0 0
        %1246 = vmatpush1.bf16.msra.mxu0 %v1230
        %1247 = vmatprep.subr.bf16.mxu0 0
        %1248 = vmatpush1.bf16.msra.mxu0 %v1229
        %1249 = vmatprep.subr.bf16.mxu0 0
        %1250 = vmatpush1.bf16.msra.mxu0 %v1228
        %1251 = vmatprep.subr.bf16.mxu0 0
        %1252 = vmatpush1.bf16.msra.mxu0 %v1227
        %1253 = vmatprep.subr.bf16.mxu0 0
        %1254 = vmatpush1.bf16.msra.mxu0 %v1226
        %1255 = vmatprep.subr.bf16.mxu0 0
        %1256 = vmatpush1.bf16.msra.mxu0 %v1225
        %1257 = vmatprep.subr.bf16.mxu0 0
        %1258 = vmatpush2.bf16.msra.mxu0 0
        %1259 = vmatprep.subr.bf16.mxu0 0
        %1260 = vmatpush2.bf16.msra.mxu0 0
        %1261 = vmatprep.subr.bf16.mxu0 0
        %1262 = vmatpush2.bf16.msra.mxu0 0
        %1263 = vmatprep.subr.bf16.mxu0 0
        %1264 = vmatpush2.bf16.msra.mxu0 0
        %1265 = vmatprep.subr.bf16.mxu0 0
        %1266 = vmatpush2.bf16.msra.mxu0 0
        %1267 = vmatprep.subr.bf16.mxu0 0
        %1268 = vmatpush2.bf16.msra.mxu0 0
        %1269 = vmatprep.subr.bf16.mxu0 0
        %1270 = vmatpush2.bf16.msra.mxu0 0
        %1271 = vmatprep.subr.bf16.mxu0 0
        %1272 = vmatpush2.bf16.msra.mxu0 0
        %1273 = vmatprep.mubr.bf16.mxu0 0
        %1274 = vmatmul.mubr.bf16.gmra.mxu0 %v1178
        %v1275 = vpop.f32.mrf.mxu0
        %v1276 = vadd.f32 0.0, %v1275
        %v1277 = vpop.f32.mrf.mxu0
        %v1278 = vpop.f32.mrf.mxu0
        %v1279 = vadd.f32 0.0, %v1278
        %v1280 = vpop.f32.mrf.mxu0
        %1281 = vmatprep.mubr.bf16.mxu0 0
        %1282 = vmatmul.mubr.bf16.gmra.mxu0 %v1186
        %v1283 = vpop.f32.mrf.mxu0
        %v1284 = vpop.f32.mrf.mxu0
        %v1285 = vpop.f32.mrf.mxu0
        %v1286 = vadd.f32 0.0, %v1285
        %v1287 = vpop.f32.mrf.mxu0
        %1288 = vmatprep.mubr.bf16.mxu0 0
        %1289 = vmatmul.mubr.bf16.gmra.mxu0 %v1189
        %v1290 = vpop.f32.mrf.mxu0
        %v1291 = vadd.f32 0.0, %v1290
        %v1292 = vpop.f32.mrf.mxu0
        %v1293 = vpop.f32.mrf.mxu0
        %v1294 = vpop.f32.mrf.mxu0
        %1295 = vdwg.mxu0
        %v1296 = vadd.f32 %v1109, %v1276
        %v1297 = vadd.f32 %v1112, %v1279
        %v1298 = vadd.f32 %v1119, %v1286
        %v1299 = vadd.f32 %v1124, %v1291
        %v1300 = vld [vmem:[%s4] sm:$0x1]
        %v1302 = vlaneseq
        %v1303 = vshrl.u32 %v1302, 7
        %v1304 = vsub.s32 0, %v1303
        %v1305 = vrot.slane %v1300, %v1304
        %v1307 = vadd.f32 %v1296, %v1305
        %v1308 = vadd.f32 %v1297, %v1305
        %v1309 = vadd.f32 %v1298, %v1305
        %v1310 = vadd.f32 %v1299, %v1305
        %v1311 = vld [vmem:[%s238] sm:$0xff]
        %v1312 = vld [vmem:[%s238 + $0x8] sm:$0xff]
        %v1313 = vadd.f32 %v1307, %v1311
        %v1314 = vadd.f32 %v1308, %v1312
        %v1315 = vmax.f32 %v1313, 0.0
        %v1316 = vmax.f32 %v1314, 0.0
        %1317 = vst [vmem:[%s272] sm:$0xff] %v1315
        %1318 = vst [vmem:[%s272 + $0x8] sm:$0xff] %v1316
        %v1319 = vld [vmem:[%s306] sm:$0xff]
        %v1320 = vld [vmem:[%s306 + $0x8] sm:$0xff]
        %v1321 = vadd.f32 %v1309, %v1319
        %v1322 = vadd.f32 %v1310, %v1320
        %v1323 = vmax.f32 %v1321, 0.0
        %v1324 = vmax.f32 %v1322, 0.0
        %s1325 = scalar_lea.vmem %s272, 16 [#allocation10]
        %1326 = vst [vmem:[%s1325] sm:$0xff] %v1323
        %1327 = vst [vmem:[%s1325 + $0x8] sm:$0xff] %v1324
        %s1328 = sand.u32 %s141, 1
        %s1329 = scalar_lea.sflag [#allocation6], %s1328
        %s1330 = sand.u32 %s141, 1
        %s1331 = smul.addr %s1330, 32
        %s1332 = scalar_lea.vmem [#allocation10], %s1331
        // Predicated region
        $region53: #{tpu_custom_call.1} parent=39 // pred_check
          %p1333 = pneg %p151
        $region54: #{tpu_custom_call.1} parent=39 // pred_check_branch
          %1335 = sbr.rel (%p1333) target = $region56
        $region55: #{tpu_custom_call.1} parent=39 // pred_region
          %s1336 = smul.u32 2, %s23
          %s1338 = ssub.s32 512, 512
          %1339 = vsyncadd %s1329, %s1338
          %s1340 = smul.addr %s1336, 2
          %s1341 = smul.addr %s1340, 128
          %s1342 = scalar_lea.hbm %s5, %s1341
          %s1343 = sshll.u32 %s1332, 4
          %s1344 = int_to_ptr.vmem [resolvable:$true] %s1343
          %1349 = dma.vmem_to_hbm [thread:$0]  %s1344, 512, %s1342, %s1329, 128, 128, 8
        $region56: #{tpu_custom_call.1} parent=39 // pred_fallthru
          _
      $region40: #{tpu_custom_call.1} parent=5 // pred_fallthru
        _
      %p1350 = scmp.le.s32.totalorder 2, %s18
      // Predicated region
      $region57: #{tpu_custom_call.1} parent=5 // pred_check
        %p1351 = pneg %p1350
      $region58: #{tpu_custom_call.1} parent=5 // pred_check_branch
        %1353 = sbr.rel (%p1351) target = $region60
      $region59: #{tpu_custom_call.1} parent=5 // pred_region
        %s1354 = ssub.s32 %s18, 2
        // Predicated region
        $region61: #{tpu_custom_call.1} parent=59 // pred_check
          %p1355 = pneg %p157
        $region62: #{tpu_custom_call.1} parent=59 // pred_check_branch
          %1357 = sbr.rel (%p1355) target = $region64
        $region63: #{tpu_custom_call.1} parent=59 // pred_region
          %s1358 = sand.u32 %s142, 1
          %s1359 = scalar_lea.sflag [#allocation6], %s1358
          %s1360 = sand.u32 %s142, 1
          %s1361 = smul.addr %s1360, 32
          %s1362 = scalar_lea.vmem [#allocation10], %s1361
          %1363 = dma.done %s1359, 512
        $region64: #{tpu_custom_call.1} parent=59 // pred_fallthru
          _
      $region60: #{tpu_custom_call.1} parent=5 // pred_fallthru
        _
    $region6: #{tpu_custom_call.1} parent=1 // loop_footer
      %s22 = sadd.s32 1, %s18
    $region7: #{tpu_custom_call.1} parent=1 // loop_footer_branch
      %17 = sbr.rel target = $region3
    $region8: #{tpu_custom_call.1} parent=1 // loop_exit
      _
    %1364 = vsyncpa [#allocation5], 1
    %s1365 = scalar_lea.sflag [#allocation5], 1
    %1366 = vsyncpa %s1365, 1
    %1367 = vsyncpa [#allocation8], 1
    %1368 = vsyncpa [#allocation6], 1
    %s1369 = scalar_lea.sflag [#allocation6], 1
    %1370 = vsyncpa %s1369, 1

</llo_original>
